<compile_context>
chip_gen: v6e
topology: v6e:2x2x1
jax: 0.10.0
libtpu: 0.0.40
codegen_flags: <defaults>
</compile_context>

<pallas_src>
import math

import jax
import jax.numpy as jnp
from jax.experimental import pallas as pl
from jax.experimental.pallas import tpu as pltpu

INV_SQRT2 = 1.0 / math.sqrt(2.0)  # unbiased std over 2 samples: |a-b|/sqrt(2)
LANE = 128                        # lane width: feature dims padded to this
SUBLANE_PACK = 16                 # bf16 sublane packing -> 16-aligned row segs


def _round_up(x, m):
    return (x + m - 1) // m * m


def _make_kernel(seg_wi, seg_wt, Hpad):
    """Kernel closure over the static packed-weight row layout."""

    def kernel(img_ref, txt_ref, wf_ref, wb_ref, bd_ref, bo_ref, out_ref):
        f32 = jnp.float32
        cdt = wf_ref.dtype  # MXU operand dtype (bf16); accumulation stays f32.

        # In-kernel cast (rides the VPU under the MXU; avoids a wrapper pass).
        img = img_ref[...].astype(cdt)
        txt = txt_ref[...].astype(cdt)

        # Front projections with the seq-len-1 attention folded in.  No bias
        # adds here: biases are fully folded into bd_ref / bo_ref.
        v2e = jnp.dot(img, wf_ref[0:seg_wi, :], preferred_element_type=f32)
        e2v = jnp.dot(txt, wf_ref[seg_wi:seg_wi + seg_wt, :],
                      preferred_element_type=f32)

        # torch.std_mean over the 2-stack, with 1/sqrt(2) and 0.5 folded into
        # the back weights: only |a-b+bd| and (a+b) are needed (VPU, f32).
        d = jnp.abs(e2v - v2e + bd_ref[...]).astype(cdt)
        s = (e2v + v2e).astype(cdt)

        # fc1 and fc2 folded into a single pair of matmuls (std / mean paths),
        # plus one fused output bias.  Output feature dim is lane-padded so the
        # final stores are unmasked vst.
        out = (jnp.dot(d, wb_ref[0:Hpad, :], preferred_element_type=f32)
               + jnp.dot(s, wb_ref[Hpad:2 * Hpad, :], preferred_element_type=f32)
               + bo_ref[...])
        out_ref[...] = out.astype(out_ref.dtype)

    return kernel


def fold_and_pack_params(params, compute_dtype=jnp.bfloat16):
    """One-time host-side algebraic folding + lane/sublane padding + packing.

    Returns a dict with:
      w_front: [seg_wi+seg_wt, Hpad] compute_dtype — folded image/text weights
      w_back:  [2*Hpad, Apad]        compute_dtype — folded (fc1@fc2) std/mean
      b_diff:  [1, Hpad] f32 — bias added before the abs (diff path)
      b_out:   [1, Apad] f32 — fully folded output bias
      dims: static layout metadata used by the kernel / wrapper.
    """
    wi, bi = params["wi"], params["bi"]
    wt, bt = params["wt"], params["bt"]
    wv, bv = params["wv"], params["bv"]
    wo, bo = params["wo"], params["bo"]
    w1, b1 = params["w1"], params["b1"]
    w2, b2 = params["w2"], params["b2"]

    R, H = wi.shape
    A = wt.shape[0]
    Aout = w2.shape[1]

    # Fold seq-len-1 attention: out_proj(v_proj(x)) == x @ W_att + b_att.
    W_att = wv @ wo
    b_att = bv @ wo + bo
    Wi_f = wi @ W_att
    bi_f = bi @ W_att + b_att          # image path -> v2e bias
    Wt_f = wt @ W_att
    bt_f = bt @ W_att + b_att          # text path  -> e2v bias

    # Fold fc1 (split over the [std | mean] concat, std_mean constants folded)
    # together with fc2 — there is no nonlinearity between them.
    W_diff = (w1[:H, :] @ w2) * INV_SQRT2     # multiplies |e2v - v2e|
    W_sum = (w1[H:, :] @ w2) * 0.5            # multiplies (e2v + v2e)

    # Bias folding: only the diff-path bias must stay inside the abs; the
    # sum-path bias is constant and goes straight into the output bias.
    b_diff = bt_f - bi_f                                   # [1, H]
    b_out = (bt_f + bi_f) @ W_sum + b1 @ w2 + b2           # [1, Aout]

    Hpad = _round_up(H, LANE)
    Apad = _round_up(Aout, LANE)
    seg_wi = _round_up(R, SUBLANE_PACK)
    seg_wt = _round_up(A, SUBLANE_PACK)

    def pad2(x, rows, cols):
        return jnp.pad(x, ((0, rows - x.shape[0]), (0, cols - x.shape[1])))

    w_front = jnp.concatenate(
        [pad2(Wi_f, seg_wi, Hpad), pad2(Wt_f, seg_wt, Hpad)], axis=0
    ).astype(compute_dtype)
    w_back = jnp.concatenate(
        [pad2(W_diff, Hpad, Apad), pad2(W_sum, Hpad, Apad)], axis=0
    ).astype(compute_dtype)

    b_diff_p = pad2(b_diff, 1, Hpad).astype(jnp.float32)
    b_out_p = pad2(b_out, 1, Apad).astype(jnp.float32)

    return dict(
        w_front=w_front, w_back=w_back, b_diff=b_diff_p, b_out=b_out_p,
        dims=dict(R=R, A=A, H=H, Aout=Aout, Hpad=Hpad, Apad=Apad,
                  seg_wi=seg_wi, seg_wt=seg_wt),
        compute_dtype=compute_dtype,
    )


def _pick_batch_tile(B, batch_tile, min_blocks):
    """Largest tile <= batch_tile that is a multiple of 8 (or the whole batch),
    shrunk so the grid has >= min_blocks blocks when the batch allows it
    (feeds both TensorCores on v7x; near-free elsewhere)."""
    tb = min(B, batch_tile)
    if min_blocks > 1 and B >= 8 * min_blocks:
        tb = min(tb, _round_up(pl.cdiv(B, min_blocks), 8))
    if tb == B:
        return tb
    tb = max(8, (tb // 8) * 8)
    while tb > 8 and B % tb != 0:     # prefer full blocks (unmasked stores)
        tb -= 8
    return tb


def zeroshot_forward(image_features, text_embeddings, packed, *,
                     batch_tile=256, out_dtype=None, min_grid_blocks=2):
    """Run the fully-folded ZeroShotModel forward as a single pallas_call."""
    d = packed["dims"]
    R, A, Aout = d["R"], d["A"], d["Aout"]
    Hpad, Apad = d["Hpad"], d["Apad"]
    seg_wi, seg_wt = d["seg_wi"], d["seg_wt"]

    w_front, w_back = packed["w_front"], packed["w_back"]
    b_diff, b_out = packed["b_diff"], packed["b_out"]

    B = image_features.shape[0]
    if out_dtype is None:
        # Match the caller's dtype (module semantics). Pass jnp.bfloat16 to
        # halve HBM writeback — the biggest store-side win on v5e.
        out_dtype = image_features.dtype

    # Keep contraction dims on bf16 (16,128) tile boundaries so the in-kernel
    # weight slices are free views.  No-op when res/att sizes are 16-aligned.
    if seg_wi != R:
        image_features = jnp.pad(image_features, ((0, 0), (0, seg_wi - R)))
    if seg_wt != A:
        text_embeddings = jnp.pad(text_embeddings, ((0, 0), (0, seg_wt - A)))

    tb = _pick_batch_tile(B, batch_tile, min_grid_blocks)
    grid = (pl.cdiv(B, tb),)

    kernel = _make_kernel(seg_wi, seg_wt, Hpad)

    out_isize = jnp.dtype(out_dtype).itemsize
    in_isize = jnp.dtype(image_features.dtype).itemsize

    # Explicit VMEM budget: resident weights/biases (worst case double-buffered)
    # + double-buffered activation/output tiles + live f32 temps, 2x margin.
    est = (2 * (w_front.nbytes + w_back.nbytes + b_diff.nbytes + b_out.nbytes)
           + 2 * tb * (seg_wi + seg_wt) * in_isize
           + 2 * tb * Apad * out_isize
           + 6 * tb * Hpad * 4)
    vmem_limit = int(min(max(2 * est, 32 * 1024 * 1024), 64 * 1024 * 1024))

    flops = 2 * B * (seg_wi * Hpad + seg_wt * Hpad + 2 * Hpad * Apad)
    bytes_accessed = int(image_features.nbytes + text_embeddings.nbytes
                         + w_front.nbytes + w_back.nbytes
                         + b_diff.nbytes + b_out.nbytes
                         + B * Apad * out_isize)
    cost = pl.CostEstimate(flops=flops, transcendentals=0,
                           bytes_accessed=bytes_accessed)

    def build(single_buffer_consts):
        # Constant-index (VMEM-resident) operands don't need double buffering.
        ck = dict(pipeline_mode=pl.Buffered(1)) if single_buffer_consts else {}
        in_specs = [
            pl.BlockSpec((tb, seg_wi), lambda i: (i, 0)),    # image tile (f32)
            pl.BlockSpec((tb, seg_wt), lambda i: (i, 0)),    # text tile (f32)
            pl.BlockSpec(w_front.shape, lambda i: (0, 0), **ck),
            pl.BlockSpec(w_back.shape, lambda i: (0, 0), **ck),
            pl.BlockSpec(b_diff.shape, lambda i: (0, 0), **ck),
            pl.BlockSpec(b_out.shape, lambda i: (0, 0), **ck),
        ]
        return pl.pallas_call(
            kernel,
            out_shape=jax.ShapeDtypeStruct((B, Apad), out_dtype),
            grid=grid,
            in_specs=in_specs,
            out_specs=pl.BlockSpec((tb, Apad), lambda i: (i, 0)),
            compiler_params=pltpu.CompilerParams(
                dimension_semantics=("parallel",),           # 2nd TC on v7x
                vmem_limit_bytes=vmem_limit),
            cost_estimate=cost,
        )

    args = (image_features, text_embeddings, w_front, w_back, b_diff, b_out)
    try:
        out = jax.block_until_ready(build(True)(*args))
    except Exception:
        # Some jax/Mosaic versions reject single-buffered pipeline_mode; the
        # default (double-buffered) resident weights are correct, just larger.
        out = jax.block_until_ready(build(False)(*args))

    return out[:, :Aout]


def zeroshot_reference(image_features, text_embeddings, params):
    """Pure-JAX f32 reference with the original (unfolded) math."""
    img_h = image_features @ params["wi"] + params["bi"]
    txt_h = text_embeddings @ params["wt"] + params["bt"]

    def attn_seq1(value):
        # seq-len-1 MultiheadAttention: softmax over a single key == 1, so the
        # output is out_proj(v_proj(value)) regardless of the query.
        v = value @ params["wv"] + params["bv"]
        return v @ params["wo"] + params["bo"]

    e2v = attn_seq1(txt_h)
    v2e = attn_seq1(img_h)
    mean = 0.5 * (e2v + v2e)
    std = jnp.abs(e2v - v2e) * INV_SQRT2
    fused = jnp.concatenate([std, mean], axis=-1)   # [std | mean] (name swap)
    h = fused @ params["w1"] + params["b1"]
    return h @ params["w2"] + params["b2"]


def make_params(key, res_size, att_size, hidden_dim):
    """Deterministic synthetic parameters (module shapes, not a checkpoint)."""
    ks = jax.random.split(key, 7)

    def lin(k, fan_in, fan_out):
        kw, kb = jax.random.split(k)
        scale = 1.0 / math.sqrt(fan_in)
        w = jax.random.uniform(kw, (fan_in, fan_out), jnp.float32, -scale, scale)
        b = jax.random.uniform(kb, (1, fan_out), jnp.float32, -scale, scale)
        return w, b

    wi, bi = lin(ks[0], res_size, hidden_dim)        # image_fc
    wt, bt = lin(ks[1], att_size, hidden_dim)        # text_fc
    wv, bv = lin(ks[2], hidden_dim, hidden_dim)      # attention in_proj (V)
    wo, bo = lin(ks[3], hidden_dim, hidden_dim)      # attention out_proj
    w1, b1 = lin(ks[4], 2 * hidden_dim, hidden_dim)  # fc1
    w2, b2 = lin(ks[5], hidden_dim, att_size)        # fc2
    return dict(wi=wi, bi=bi, wt=wt, bt=bt, wv=wv, bv=bv,
                wo=wo, bo=bo, w1=w1, b1=b1, w2=w2, b2=b2)


if __name__ == "__main__":
    # Small opt-like config.  batch=16 -> two batch blocks of 8 so the
    # "parallel" batch axis actually has >=2 blocks (v7x 2nd TensorCore).
    B, RES_SIZE, ATT_SIZE, HIDDEN_DIM = 16, 64, 32, 32

    key = jax.random.PRNGKey(0)
    k_img, k_txt, k_par = jax.random.split(key, 3)

    image_features = jax.random.normal(k_img, (B, RES_SIZE), jnp.float32)
    text_embeddings = jax.random.normal(k_txt, (B, ATT_SIZE), jnp.float32)
    params = make_params(k_par, RES_SIZE, ATT_SIZE, HIDDEN_DIM)

    packed = fold_and_pack_params(params, compute_dtype=jnp.bfloat16)

    out = zeroshot_forward(image_features, text_embeddings, packed)
    out = jax.block_until_ready(out)

    ref = zeroshot_reference(image_features, text_embeddings, params)
    assert out.shape == (B, ATT_SIZE), out.shape
    # bf16 MXU operands + algebraic weight folding change f32 rounding order vs
    # the pure-f32 reference, so the tolerance is relaxed accordingly.
    assert jnp.allclose(out, ref, atol=5e-2, rtol=5e-2), "kernel mismatch vs reference"

    print("KERNEL_OK")
</pallas_src>

<mosaic_0001>
module attributes {stable_mosaic.version = 11 : i64} {
  func.func @kernel(%arg0: i32, %arg1: memref<8x64xf32, #tpu.memory_space<vmem>>, %arg2: memref<8x32xf32, #tpu.memory_space<vmem>>, %arg3: memref<96x128xbf16, #tpu.memory_space<vmem>>, %arg4: memref<256x128xbf16, #tpu.memory_space<vmem>>, %arg5: memref<1x128xf32, #tpu.memory_space<vmem>>, %arg6: memref<1x128xf32, #tpu.memory_space<vmem>>, %arg7: memref<8x128xf32, #tpu.memory_space<vmem>>) attributes {dimension_semantics = [#tpu.dimension_semantics<parallel>], iteration_bounds = array<i64: 2>, scalar_prefetch = 0 : i64, scratch_operands = 0 : i64, tpu.core_type = #tpu.core_type<tc>, window_params = [{transform_indices = @transform_0, window_bounds = array<i64: 8, 64>}, {transform_indices = @transform_1, window_bounds = array<i64: 8, 32>}, {pipeline_mode = #tpu.pipeline_mode<synchronous>, transform_indices = @transform_2, window_bounds = array<i64: 96, 128>}, {pipeline_mode = #tpu.pipeline_mode<synchronous>, transform_indices = @transform_3, window_bounds = array<i64: 256, 128>}, {pipeline_mode = #tpu.pipeline_mode<synchronous>, transform_indices = @transform_4, window_bounds = array<i64: 1, 128>}, {pipeline_mode = #tpu.pipeline_mode<synchronous>, transform_indices = @transform_5, window_bounds = array<i64: 1, 128>}, {transform_indices = @transform_6, window_bounds = array<i64: 8, 128>}]} {
    %c0 = arith.constant 0 : index
    %c0_0 = arith.constant 0 : index
    %0 = vector.load %arg1[%c0, %c0_0] : memref<8x64xf32, #tpu.memory_space<vmem>>, vector<8x64xf32>
    %1 = arith.truncf %0 : vector<8x64xf32> to vector<8x64xbf16>
    %c0_1 = arith.constant 0 : index
    %c0_2 = arith.constant 0 : index
    %2 = vector.load %arg2[%c0_1, %c0_2] : memref<8x32xf32, #tpu.memory_space<vmem>>, vector<8x32xf32>
    %3 = arith.truncf %2 : vector<8x32xf32> to vector<8x32xbf16>
    %c0_3 = arith.constant 0 : index
    %c0_4 = arith.constant 0 : index
    %4 = vector.load %arg3[%c0_3, %c0_4] : memref<96x128xbf16, #tpu.memory_space<vmem>>, vector<64x128xbf16>
    %cst = arith.constant dense<0.000000e+00> : vector<8x128xf32>
    %5 = tpu.matmul %1, %4, %cst {dimension_numbers = #tpu.dot_dimension_numbers<[1], [0], [0], [1], [0, 0, 1, 1], [], []>} : vector<8x64xbf16>, vector<64x128xbf16>, vector<8x128xf32> -> vector<8x128xf32>
    %c64 = arith.constant 64 : index
    %c0_5 = arith.constant 0 : index
    %6 = vector.load %arg3[%c64, %c0_5] : memref<96x128xbf16, #tpu.memory_space<vmem>>, vector<32x128xbf16>
    %cst_6 = arith.constant dense<0.000000e+00> : vector<8x128xf32>
    %7 = tpu.matmul %3, %6, %cst_6 {dimension_numbers = #tpu.dot_dimension_numbers<[1], [0], [0], [1], [0, 0, 1, 1], [], []>} : vector<8x32xbf16>, vector<32x128xbf16>, vector<8x128xf32> -> vector<8x128xf32>
    %8 = arith.subf %7, %5 : vector<8x128xf32>
    %c0_7 = arith.constant 0 : index
    %c0_8 = arith.constant 0 : index
    %9 = vector.load %arg5[%c0_7, %c0_8] : memref<1x128xf32, #tpu.memory_space<vmem>>, vector<1x128xf32>
    %10 = vector.broadcast %9 : vector<1x128xf32> to vector<8x128xf32>
    %11 = arith.addf %8, %10 : vector<8x128xf32>
    %12 = math.absf %11 : vector<8x128xf32>
    %13 = arith.truncf %12 : vector<8x128xf32> to vector<8x128xbf16>
    %14 = arith.addf %7, %5 : vector<8x128xf32>
    %15 = arith.truncf %14 : vector<8x128xf32> to vector<8x128xbf16>
    %c0_9 = arith.constant 0 : index
    %c0_10 = arith.constant 0 : index
    %16 = vector.load %arg4[%c0_9, %c0_10] : memref<256x128xbf16, #tpu.memory_space<vmem>>, vector<128x128xbf16>
    %cst_11 = arith.constant dense<0.000000e+00> : vector<8x128xf32>
    %17 = tpu.matmul %13, %16, %cst_11 {dimension_numbers = #tpu.dot_dimension_numbers<[1], [0], [0], [1], [0, 0, 1, 1], [], []>} : vector<8x128xbf16>, vector<128x128xbf16>, vector<8x128xf32> -> vector<8x128xf32>
    %c128 = arith.constant 128 : index
    %c0_12 = arith.constant 0 : index
    %18 = vector.load %arg4[%c128, %c0_12] : memref<256x128xbf16, #tpu.memory_space<vmem>>, vector<128x128xbf16>
    %cst_13 = arith.constant dense<0.000000e+00> : vector<8x128xf32>
    %19 = tpu.matmul %15, %18, %cst_13 {dimension_numbers = #tpu.dot_dimension_numbers<[1], [0], [0], [1], [0, 0, 1, 1], [], []>} : vector<8x128xbf16>, vector<128x128xbf16>, vector<8x128xf32> -> vector<8x128xf32>
    %20 = arith.addf %17, %19 : vector<8x128xf32>
    %c0_14 = arith.constant 0 : index
    %c0_15 = arith.constant 0 : index
    %21 = vector.load %arg6[%c0_14, %c0_15] : memref<1x128xf32, #tpu.memory_space<vmem>>, vector<1x128xf32>
    %22 = vector.broadcast %21 : vector<1x128xf32> to vector<8x128xf32>
    %23 = arith.addf %20, %22 : vector<8x128xf32>
    %c0_16 = arith.constant 0 : index
    %c0_17 = arith.constant 0 : index
    %24 = vector.load %arg7[%c0_16, %c0_17] : memref<8x128xf32, #tpu.memory_space<vmem>>, vector<8x128xf32>
    tpu.vector_store %arg7[%c0_16, %c0_17], %23 {strides = array<i32>} : memref<8x128xf32, #tpu.memory_space<vmem>>, vector<8x128xf32>,
    return
  }
  func.func @transform_0(%arg0: i32) -> (i32, i32) {
    %c0_i32 = arith.constant 0 : i32
    %c0_i32_0 = arith.constant 0 : i32
    return %arg0, %c0_i32 : i32, i32
  }
  func.func @transform_1(%arg0: i32) -> (i32, i32) {
    %c0_i32 = arith.constant 0 : i32
    %c0_i32_0 = arith.constant 0 : i32
    return %arg0, %c0_i32 : i32, i32
  }
  func.func @transform_2(%arg0: i32) -> (i32, i32) {
    %c0_i32 = arith.constant 0 : i32
    %c0_i32_0 = arith.constant 0 : i32
    %c0_i32_1 = arith.constant 0 : i32
    return %c0_i32, %c0_i32_0 : i32, i32
  }
  func.func @transform_3(%arg0: i32) -> (i32, i32) {
    %c0_i32 = arith.constant 0 : i32
    %c0_i32_0 = arith.constant 0 : i32
    %c0_i32_1 = arith.constant 0 : i32
    return %c0_i32, %c0_i32_0 : i32, i32
  }
  func.func @transform_4(%arg0: i32) -> (i32, i32) {
    %c0_i32 = arith.constant 0 : i32
    %c0_i32_0 = arith.constant 0 : i32
    %c0_i32_1 = arith.constant 0 : i32
    return %c0_i32, %c0_i32_0 : i32, i32
  }
  func.func @transform_5(%arg0: i32) -> (i32, i32) {
    %c0_i32 = arith.constant 0 : i32
    %c0_i32_0 = arith.constant 0 : i32
    %c0_i32_1 = arith.constant 0 : i32
    return %c0_i32, %c0_i32_0 : i32, i32
  }
  func.func @transform_6(%arg0: i32) -> (i32, i32) {
    %c0_i32 = arith.constant 0 : i32
    %c0_i32_0 = arith.constant 0 : i32
    return %arg0, %c0_i32 : i32, i32
  }
}

module attributes {stable_mosaic.version = 11 : i64} {
  func.func @kernel(%arg0: i32, %arg1: memref<8x64xf32, #tpu.memory_space<vmem>>, %arg2: memref<8x32xf32, #tpu.memory_space<vmem>>, %arg3: memref<96x128xbf16, #tpu.memory_space<vmem>>, %arg4: memref<256x128xbf16, #tpu.memory_space<vmem>>, %arg5: memref<1x128xf32, #tpu.memory_space<vmem>>, %arg6: memref<1x128xf32, #tpu.memory_space<vmem>>, %arg7: memref<8x128xf32, #tpu.memory_space<vmem>>) attributes {dimension_semantics = [#tpu.dimension_semantics<parallel>], iteration_bounds = array<i64: 2>, scalar_prefetch = 0 : i64, scratch_operands = 0 : i64, tpu.core_type = #tpu.core_type<tc>, window_params = [{transform_indices = @transform_0, window_bounds = array<i64: 8, 64>}, {transform_indices = @transform_1, window_bounds = array<i64: 8, 32>}, {pipeline_mode = #tpu.pipeline_mode<synchronous>, transform_indices = @transform_2, window_bounds = array<i64: 96, 128>}, {pipeline_mode = #tpu.pipeline_mode<synchronous>, transform_indices = @transform_3, window_bounds = array<i64: 256, 128>}, {pipeline_mode = #tpu.pipeline_mode<synchronous>, transform_indices = @transform_4, window_bounds = array<i64: 1, 128>}, {pipeline_mode = #tpu.pipeline_mode<synchronous>, transform_indices = @transform_5, window_bounds = array<i64: 1, 128>}, {transform_indices = @transform_6, window_bounds = array<i64: 8, 128>}]} {
    %c0 = arith.constant 0 : index
    %c0_0 = arith.constant 0 : index
    %0 = vector.load %arg1[%c0, %c0_0] : memref<8x64xf32, #tpu.memory_space<vmem>>, vector<8x64xf32>
    %1 = arith.truncf %0 : vector<8x64xf32> to vector<8x64xbf16>
    %c0_1 = arith.constant 0 : index
    %c0_2 = arith.constant 0 : index
    %2 = vector.load %arg2[%c0_1, %c0_2] : memref<8x32xf32, #tpu.memory_space<vmem>>, vector<8x32xf32>
    %3 = arith.truncf %2 : vector<8x32xf32> to vector<8x32xbf16>
    %c0_3 = arith.constant 0 : index
    %c0_4 = arith.constant 0 : index
    %4 = vector.load %arg3[%c0_3, %c0_4] : memref<96x128xbf16, #tpu.memory_space<vmem>>, vector<64x128xbf16>
    %cst = arith.constant dense<0.000000e+00> : vector<8x128xf32>
    %5 = tpu.matmul %1, %4, %cst {dimension_numbers = #tpu.dot_dimension_numbers<[1], [0], [0], [1], [0, 0, 1, 1], [], []>} : vector<8x64xbf16>, vector<64x128xbf16>, vector<8x128xf32> -> vector<8x128xf32>
    %c64 = arith.constant 64 : index
    %c0_5 = arith.constant 0 : index
    %6 = vector.load %arg3[%c64, %c0_5] : memref<96x128xbf16, #tpu.memory_space<vmem>>, vector<32x128xbf16>
    %cst_6 = arith.constant dense<0.000000e+00> : vector<8x128xf32>
    %7 = tpu.matmul %3, %6, %cst_6 {dimension_numbers = #tpu.dot_dimension_numbers<[1], [0], [0], [1], [0, 0, 1, 1], [], []>} : vector<8x32xbf16>, vector<32x128xbf16>, vector<8x128xf32> -> vector<8x128xf32>
    %8 = arith.subf %7, %5 : vector<8x128xf32>
    %c0_7 = arith.constant 0 : index
    %c0_8 = arith.constant 0 : index
    %9 = vector.load %arg5[%c0_7, %c0_8] : memref<1x128xf32, #tpu.memory_space<vmem>>, vector<1x128xf32>
    %10 = vector.broadcast %9 : vector<1x128xf32> to vector<8x128xf32>
    %11 = arith.addf %8, %10 : vector<8x128xf32>
    %12 = math.absf %11 : vector<8x128xf32>
    %13 = arith.truncf %12 : vector<8x128xf32> to vector<8x128xbf16>
    %14 = arith.addf %7, %5 : vector<8x128xf32>
    %15 = arith.truncf %14 : vector<8x128xf32> to vector<8x128xbf16>
    %c0_9 = arith.constant 0 : index
    %c0_10 = arith.constant 0 : index
    %16 = vector.load %arg4[%c0_9, %c0_10] : memref<256x128xbf16, #tpu.memory_space<vmem>>, vector<128x128xbf16>
    %cst_11 = arith.constant dense<0.000000e+00> : vector<8x128xf32>
    %17 = tpu.matmul %13, %16, %cst_11 {dimension_numbers = #tpu.dot_dimension_numbers<[1], [0], [0], [1], [0, 0, 1, 1], [], []>} : vector<8x128xbf16>, vector<128x128xbf16>, vector<8x128xf32> -> vector<8x128xf32>
    %c128 = arith.constant 128 : index
    %c0_12 = arith.constant 0 : index
    %18 = vector.load %arg4[%c128, %c0_12] : memref<256x128xbf16, #tpu.memory_space<vmem>>, vector<128x128xbf16>
    %cst_13 = arith.constant dense<0.000000e+00> : vector<8x128xf32>
    %19 = tpu.matmul %15, %18, %cst_13 {dimension_numbers = #tpu.dot_dimension_numbers<[1], [0], [0], [1], [0, 0, 1, 1], [], []>} : vector<8x128xbf16>, vector<128x128xbf16>, vector<8x128xf32> -> vector<8x128xf32>
    %20 = arith.addf %17, %19 : vector<8x128xf32>
    %c0_14 = arith.constant 0 : index
    %c0_15 = arith.constant 0 : index
    %21 = vector.load %arg6[%c0_14, %c0_15] : memref<1x128xf32, #tpu.memory_space<vmem>>, vector<1x128xf32>
    %22 = vector.broadcast %21 : vector<1x128xf32> to vector<8x128xf32>
    %23 = arith.addf %20, %22 : vector<8x128xf32>
    %c0_16 = arith.constant 0 : index
    %c0_17 = arith.constant 0 : index
    %24 = vector.load %arg7[%c0_16, %c0_17] : memref<8x128xf32, #tpu.memory_space<vmem>>, vector<8x128xf32>
    tpu.vector_store %arg7[%c0_16, %c0_17], %23 {strides = array<i32>} : memref<8x128xf32, #tpu.memory_space<vmem>>, vector<8x128xf32>,
    return
  }
  func.func @transform_0(%arg0: i32) -> (i32, i32) {
    %c0_i32 = arith.constant 0 : i32
    %c0_i32_0 = arith.constant 0 : i32
    return %arg0, %c0_i32 : i32, i32
  }
  func.func @transform_1(%arg0: i32) -> (i32, i32) {
    %c0_i32 = arith.constant 0 : i32
    %c0_i32_0 = arith.constant 0 : i32
    return %arg0, %c0_i32 : i32, i32
  }
  func.func @transform_2(%arg0: i32) -> (i32, i32) {
    %c0_i32 = arith.constant 0 : i32
    %c0_i32_0 = arith.constant 0 : i32
    %c0_i32_1 = arith.constant 0 : i32
    return %c0_i32, %c0_i32_0 : i32, i32
  }
  func.func @transform_3(%arg0: i32) -> (i32, i32) {
    %c0_i32 = arith.constant 0 : i32
    %c0_i32_0 = arith.constant 0 : i32
    %c0_i32_1 = arith.constant 0 : i32
    return %c0_i32, %c0_i32_0 : i32, i32
  }
  func.func @transform_4(%arg0: i32) -> (i32, i32) {
    %c0_i32 = arith.constant 0 : i32
    %c0_i32_0 = arith.constant 0 : i32
    %c0_i32_1 = arith.constant 0 : i32
    return %c0_i32, %c0_i32_0 : i32, i32
  }
  func.func @transform_5(%arg0: i32) -> (i32, i32) {
    %c0_i32 = arith.constant 0 : i32
    %c0_i32_0 = arith.constant 0 : i32
    %c0_i32_1 = arith.constant 0 : i32
    return %c0_i32, %c0_i32_0 : i32, i32
  }
  func.func @transform_6(%arg0: i32) -> (i32, i32) {
    %c0_i32 = arith.constant 0 : i32
    %c0_i32_0 = arith.constant 0 : i32
    return %arg0, %c0_i32 : i32, i32
  }
}

</mosaic_0001>

<llo_original>
// kernel: tpu_custom_call.1
$region0: #{tpu_custom_call.1}
  #allocation0 [shape = 'u32[]', space=smem, size = 0x4, offset = 0x4, fixed_abs, tag = 'smem constant byte address 0x4 - core index']
  #allocation1 [shape = 'u32[144,128]{1,0:T(1,128)}', space=vmem, size = 0x12000, scoped, tag = 'internal scratch']
  %s0 = inlined_call_operand.hbm [shape: f32[16,64], index: 0, kind: input, shape index: {}]
  %s1 = inlined_call_operand.hbm [shape: f32[16,32], index: 1, kind: input, shape index: {}]
  %s2 = inlined_call_operand.hbm [shape: bf16[96,128], index: 2, kind: input, shape index: {}]
  %s3 = inlined_call_operand.hbm [shape: bf16[256,128], index: 3, kind: input, shape index: {}]
  %s4 = inlined_call_operand.vmem [shape: f32[1,128], index: 4, kind: input, shape index: {}]
  %s5 = inlined_call_operand.vmem [shape: f32[1,128], index: 5, kind: input, shape index: {}]
  %s6 = inlined_call_operand.hbm [shape: f32[16,128], index: 6, kind: output, shape index: {}]
  %s7 = sld [smem:[#allocation0]]
  $region73: #{tpu_custom_call.1} parent=0
    _
  %s9 = ssub.s32 1, %s7
  %s10 = scalar_select 0, %s9, %s7
  $region1: #{tpu_custom_call.1} parent=0
    #allocation2 [shape = 'u8[8192]{0}', space=vmem, size = 0x2000, scoped, tag = 'input window, operand 0']
    #allocation3 [shape = 's32[2]{0}', space=sflag, size = 0x8, scoped, tag = 'scoped memory for tpu_custom_call.1']
    #allocation4 [shape = 's32[2]{0}', space=sflag, size = 0x8, scoped, tag = 'scoped memory for tpu_custom_call.1']
    #allocation5 [shape = 'u8[8192]{0}', space=vmem, size = 0x2000, scoped, tag = 'input window, operand 1']
    #allocation6 [shape = 's32[2]{0}', space=sflag, size = 0x8, scoped, tag = 'scoped memory for tpu_custom_call.1']
    #allocation7 [shape = 'u8[24576]{0}', space=vmem, size = 0x6000, scoped, tag = 'input window, operand 2, single buffered']
    #allocation8 [shape = 'u8[65536]{0}', space=vmem, size = 0x10000, scoped, tag = 'input window, operand 3, single buffered']
    #allocation9 [shape = 's32[1]{0}', space=sflag, size = 0x4, scoped, tag = 'scoped memory for tpu_custom_call.1']
    #allocation10 [shape = 'u8[8192]{0}', space=vmem, size = 0x2000, scoped, tag = 'output window, operand 0']
    %11 = vsyncpa [#allocation3], 0
    %s12 = scalar_lea.sflag [#allocation3], 1
    %13 = vsyncpa %s12, 0
    %14 = vsyncpa [#allocation6], 0
    %s15 = scalar_lea.sflag [#allocation6], 1
    %16 = vsyncpa %s15, 0
    %17 = vsyncpa [#allocation9], 0
    %18 = vsyncpa [#allocation4], 0
    %s19 = scalar_lea.sflag [#allocation4], 1
    %20 = vsyncpa %s19, 0
    loop: start=0, step=1, limit=4
    $region2: #{tpu_custom_call.1} parent=1 // loop_pre_header
      _
    $region3: #{tpu_custom_call.1} parent=1 // loop_header
      %s22 = sphi 0, %s26
      %p23 = scmp.ge.s32.totalorder %s22, 4
      %s32 = sphi 0, %s34
      %s35 = sphi 0, %s32
      %s36 = sphi 0, %s35
      %s52 = sphi 0, %s36
      %s58 = sphi 0, %s60
      %s61 = sphi 0, %s58
      %s62 = sphi 0, %s61
      %s78 = sphi 0, %s62
      %s82 = sphi 0, %s82
      %s84 = sphi 0, %s82
      %s85 = sphi 0, %s84
      %s99 = sphi 0, %s85
      %s103 = sphi 0, %s103
      %s105 = sphi 0, %s103
      %s106 = sphi 0, %s105
      %s120 = sphi 0, %s106
      %s124 = sphi 0, %s124
      %s126 = sphi 0, %s124
      %s127 = sphi 0, %s126
      %s141 = sphi 0, %s127
      %s145 = sphi 0, %s145
      %s147 = sphi 0, %s145
      %s148 = sphi 0, %s147
      %s162 = sphi 0, %s148
      %s168 = sphi 0, %s170
      %s171 = sphi 0, %s168
      %s172 = sphi 0, %s171
      %s188 = sphi 0, %s172
    $region4: #{tpu_custom_call.1} parent=1 // loop_header_branch
      %25 = sbr.rel (%p23) target = $region8
    $region5: #{tpu_custom_call.1} parent=1 // loop_body
      %s27 = ssub.s32 %s22, 1
      %s28 = ssub.s32 %s22, 2
      %s29 = sadd.s32 %s22, 1
      %s30 = ssub.s32 %s22, %s29
      %p31 = scmp.eq.s32.totalorder %s30, 0
      %s33 = sadd.s32 %s32, 1
      %s34 = scalar_select %p31, %s32, %s33
      %p37 = pneg %p31
      %p38 = scmp.eq.s32.totalorder %s22, 1
      %p39 = por %p37, %p38
      %p40 = scmp.ne.s32.totalorder %s32, %s35
      %p41 = scmp.eq.s32.totalorder %s22, 0
      %p42 = por %p40, %p41
      %p43 = scmp.ne.s32.totalorder %s32, %s35
      %p44 = scmp.eq.s32.totalorder %s27, 1
      %p45 = por %p43, %p44
      %p46 = scmp.ne.s32.totalorder %s35, %s36
      %p47 = scmp.eq.s32.totalorder %s27, 0
      %p48 = por %p46, %p47
      %p49 = scmp.ne.s32.totalorder %s35, %s36
      %p50 = scmp.eq.s32.totalorder %s28, 1
      %p51 = por %p49, %p50
      %p53 = scmp.ne.s32.totalorder %s36, %s52
      %p54 = scmp.eq.s32.totalorder %s28, 0
      %p55 = por %p53, %p54
      %s56 = ssub.s32 %s22, %s29
      %p57 = scmp.eq.s32.totalorder %s56, 0
      %s59 = sadd.s32 %s58, 1
      %s60 = scalar_select %p57, %s58, %s59
      %p63 = pneg %p57
      %p64 = scmp.eq.s32.totalorder %s22, 1
      %p65 = por %p63, %p64
      %p66 = scmp.ne.s32.totalorder %s58, %s61
      %p67 = scmp.eq.s32.totalorder %s22, 0
      %p68 = por %p66, %p67
      %p69 = scmp.ne.s32.totalorder %s58, %s61
      %p70 = scmp.eq.s32.totalorder %s27, 1
      %p71 = por %p69, %p70
      %p72 = scmp.ne.s32.totalorder %s61, %s62
      %p73 = scmp.eq.s32.totalorder %s27, 0
      %p74 = por %p72, %p73
      %p75 = scmp.ne.s32.totalorder %s61, %s62
      %p76 = scmp.eq.s32.totalorder %s28, 1
      %p77 = por %p75, %p76
      %p79 = scmp.ne.s32.totalorder %s62, %s78
      %p80 = scmp.eq.s32.totalorder %s28, 0
      %p81 = por %p79, %p80
      %s83 = sadd.s32 %s82, 1
      %p86 = scmp.eq.s32.totalorder %s22, 1
      %p87 = scmp.ne.s32.totalorder %s82, %s84
      %p88 = scmp.eq.s32.totalorder %s22, 0
      %p89 = por %p87, %p88
      %p90 = scmp.ne.s32.totalorder %s82, %s84
      %p91 = scmp.eq.s32.totalorder %s27, 1
      %p92 = por %p90, %p91
      %p93 = scmp.ne.s32.totalorder %s84, %s85
      %p94 = scmp.eq.s32.totalorder %s27, 0
      %p95 = por %p93, %p94
      %p96 = scmp.ne.s32.totalorder %s84, %s85
      %p97 = scmp.eq.s32.totalorder %s28, 1
      %p98 = por %p96, %p97
      %p100 = scmp.ne.s32.totalorder %s85, %s99
      %p101 = scmp.eq.s32.totalorder %s28, 0
      %p102 = por %p100, %p101
      %s104 = sadd.s32 %s103, 1
      %p107 = scmp.eq.s32.totalorder %s22, 1
      %p108 = scmp.ne.s32.totalorder %s103, %s105
      %p109 = scmp.eq.s32.totalorder %s22, 0
      %p110 = por %p108, %p109
      %p111 = scmp.ne.s32.totalorder %s103, %s105
      %p112 = scmp.eq.s32.totalorder %s27, 1
      %p113 = por %p111, %p112
      %p114 = scmp.ne.s32.totalorder %s105, %s106
      %p115 = scmp.eq.s32.totalorder %s27, 0
      %p116 = por %p114, %p115
      %p117 = scmp.ne.s32.totalorder %s105, %s106
      %p118 = scmp.eq.s32.totalorder %s28, 1
      %p119 = por %p117, %p118
      %p121 = scmp.ne.s32.totalorder %s106, %s120
      %p122 = scmp.eq.s32.totalorder %s28, 0
      %p123 = por %p121, %p122
      %s125 = sadd.s32 %s124, 1
      %p128 = scmp.eq.s32.totalorder %s22, 1
      %p129 = scmp.ne.s32.totalorder %s124, %s126
      %p130 = scmp.eq.s32.totalorder %s22, 0
      %p131 = por %p129, %p130
      %p132 = scmp.ne.s32.totalorder %s124, %s126
      %p133 = scmp.eq.s32.totalorder %s27, 1
      %p134 = por %p132, %p133
      %p135 = scmp.ne.s32.totalorder %s126, %s127
      %p136 = scmp.eq.s32.totalorder %s27, 0
      %p137 = por %p135, %p136
      %p138 = scmp.ne.s32.totalorder %s126, %s127
      %p139 = scmp.eq.s32.totalorder %s28, 1
      %p140 = por %p138, %p139
      %p142 = scmp.ne.s32.totalorder %s127, %s141
      %p143 = scmp.eq.s32.totalorder %s28, 0
      %p144 = por %p142, %p143
      %s146 = sadd.s32 %s145, 1
      %p149 = scmp.eq.s32.totalorder %s22, 1
      %p150 = scmp.ne.s32.totalorder %s145, %s147
      %p151 = scmp.eq.s32.totalorder %s22, 0
      %p152 = por %p150, %p151
      %p153 = scmp.ne.s32.totalorder %s145, %s147
      %p154 = scmp.eq.s32.totalorder %s27, 1
      %p155 = por %p153, %p154
      %p156 = scmp.ne.s32.totalorder %s147, %s148
      %p157 = scmp.eq.s32.totalorder %s27, 0
      %p158 = por %p156, %p157
      %p159 = scmp.ne.s32.totalorder %s147, %s148
      %p160 = scmp.eq.s32.totalorder %s28, 1
      %p161 = por %p159, %p160
      %p163 = scmp.ne.s32.totalorder %s148, %s162
      %p164 = scmp.eq.s32.totalorder %s28, 0
      %p165 = por %p163, %p164
      %s166 = ssub.s32 %s22, %s29
      %p167 = scmp.eq.s32.totalorder %s166, 0
      %s169 = sadd.s32 %s168, 1
      %s170 = scalar_select %p167, %s168, %s169
      %p173 = pneg %p167
      %p174 = scmp.eq.s32.totalorder %s22, 1
      %p175 = por %p173, %p174
      %p176 = scmp.ne.s32.totalorder %s168, %s171
      %p177 = scmp.eq.s32.totalorder %s22, 0
      %p178 = por %p176, %p177
      %p179 = scmp.ne.s32.totalorder %s168, %s171
      %p180 = scmp.eq.s32.totalorder %s27, 1
      %p181 = por %p179, %p180
      %p182 = scmp.ne.s32.totalorder %s171, %s172
      %p183 = scmp.eq.s32.totalorder %s27, 0
      %p184 = por %p182, %p183
      %p185 = scmp.ne.s32.totalorder %s171, %s172
      %p186 = scmp.eq.s32.totalorder %s28, 1
      %p187 = por %p185, %p186
      %p189 = scmp.ne.s32.totalorder %s172, %s188
      %p190 = scmp.eq.s32.totalorder %s28, 0
      %p191 = por %p189, %p190
      %p192 = scmp.le.s32.totalorder 1, %s22
      %p193 = scmp.lt.s32.totalorder %s22, 3
      %p194 = pnand %p192, %p193
      %p195 = pneg %p194
      // Predicated region
      $region9: #{tpu_custom_call.1} parent=5 // pred_check
        _
      $region10: #{tpu_custom_call.1} parent=5 // pred_check_branch
        %197 = sbr.rel (%p194) target = $region12
      $region11: #{tpu_custom_call.1} parent=5 // pred_region
        %s198 = ssub.s32 %s22, 1
        // Predicated region
        $region13: #{tpu_custom_call.1} parent=11 // pred_check
          %p199 = pneg %p95
        $region14: #{tpu_custom_call.1} parent=11 // pred_check_branch
          %201 = sbr.rel (%p199) target = $region16
        $region15: #{tpu_custom_call.1} parent=11 // pred_region
          %s203 = ssub.s32 768, 768
          %204 = vsyncadd [#allocation6], %s203
          %s205 = sshll.u32 [#allocation7], 4
          %s206 = int_to_ptr.vmem [resolvable:$true] %s205
          %211 = dma.hbm_to_vmem [thread:$0]  %s2, 768, %s206, [#allocation6], 64, 64, 4
        $region16: #{tpu_custom_call.1} parent=11 // pred_fallthru
          _
        // Predicated region
        $region17: #{tpu_custom_call.1} parent=11 // pred_check
          %p212 = pneg %p116
        $region18: #{tpu_custom_call.1} parent=11 // pred_check_branch
          %214 = sbr.rel (%p212) target = $region20
        $region19: #{tpu_custom_call.1} parent=11 // pred_region
          %s216 = ssub.s32 2048, 2048
          %217 = vsyncadd [#allocation9], %s216
          %s218 = sshll.u32 [#allocation8], 4
          %s219 = int_to_ptr.vmem [resolvable:$true] %s218
          %224 = dma.hbm_to_vmem [thread:$0]  %s3, 2048, %s219, [#allocation9], 64, 64, 4
        $region20: #{tpu_custom_call.1} parent=11 // pred_fallthru
          _
        // Predicated region
        $region21: #{tpu_custom_call.1} parent=11 // pred_check
          %p225 = pneg %p137
        $region22: #{tpu_custom_call.1} parent=11 // pred_check_branch
          %227 = sbr.rel (%p225) target = $region24
        $region23: #{tpu_custom_call.1} parent=11 // pred_region
          _
        $region24: #{tpu_custom_call.1} parent=11 // pred_fallthru
          _
        // Predicated region
        $region25: #{tpu_custom_call.1} parent=11 // pred_check
          %p228 = pneg %p158
        $region26: #{tpu_custom_call.1} parent=11 // pred_check_branch
          %230 = sbr.rel (%p228) target = $region28
        $region27: #{tpu_custom_call.1} parent=11 // pred_region
          _
        $region28: #{tpu_custom_call.1} parent=11 // pred_fallthru
          _
      $region12: #{tpu_custom_call.1} parent=5 // pred_fallthru
        _
      %p231 = scmp.lt.s32.totalorder %s22, 2
      // Predicated region
      $region29: #{tpu_custom_call.1} parent=5 // pred_check
        %p232 = pneg %p231
      $region30: #{tpu_custom_call.1} parent=5 // pred_check_branch
        %234 = sbr.rel (%p232) target = $region32
      $region31: #{tpu_custom_call.1} parent=5 // pred_region
        // Predicated region
        $region33: #{tpu_custom_call.1} parent=31 // pred_check
          %p235 = pneg %p42
        $region34: #{tpu_custom_call.1} parent=31 // pred_check_branch
          %237 = sbr.rel (%p235) target = $region36
        $region35: #{tpu_custom_call.1} parent=31 // pred_region
          %s238 = sand.u32 %s32, 1
          %s239 = scalar_lea.sflag [#allocation3], %s238
          %s240 = sand.u32 %s32, 1
          %s241 = smul.addr %s240, 8
          %s242 = scalar_lea.vmem [#allocation2], %s241
          %s244 = ssub.s32 128, 128
          %245 = vsyncadd %s239, %s244
          %s246 = smul.addr %s22, 128
          %s247 = scalar_lea.hbm %s0, %s246
          %s249 = sshll.u32 %s242, 4
          %s250 = int_to_ptr.vmem [resolvable:$true] %s249
          %252 = dma.hbm_to_vmem [thread:$0]  %s247, 128, %s250, %s239
        $region36: #{tpu_custom_call.1} parent=31 // pred_fallthru
          _
        // Predicated region
        $region37: #{tpu_custom_call.1} parent=31 // pred_check
          %p253 = pneg %p68
        $region38: #{tpu_custom_call.1} parent=31 // pred_check_branch
          %255 = sbr.rel (%p253) target = $region40
        $region39: #{tpu_custom_call.1} parent=31 // pred_region
          %s256 = sand.u32 %s22, 1
          %s257 = scalar_lea.sflag [#allocation6], %s256
          %s258 = sand.u32 %s58, 1
          %s259 = smul.addr %s258, 8
          %s260 = scalar_lea.vmem [#allocation5], %s259
          %s262 = ssub.s32 128, 128
          %263 = vsyncadd %s257, %s262
          %s264 = smul.addr %s22, 128
          %s265 = scalar_lea.hbm %s1, %s264
          %s267 = sshll.u32 %s260, 4
          %s268 = int_to_ptr.vmem [resolvable:$true] %s267
          %270 = dma.hbm_to_vmem [thread:$0]  %s265, 128, %s268, %s257
        $region40: #{tpu_custom_call.1} parent=31 // pred_fallthru
          _
      $region32: #{tpu_custom_call.1} parent=5 // pred_fallthru
        _
      %p271 = scmp.le.s32.totalorder 1, %s22
      %p272 = scmp.lt.s32.totalorder %s22, 3
      %p273 = pnand %p271, %p272
      %p274 = pneg %p273
      // Predicated region
      $region41: #{tpu_custom_call.1} parent=5 // pred_check
        _
      $region42: #{tpu_custom_call.1} parent=5 // pred_check_branch
        %276 = sbr.rel (%p273) target = $region44
      $region43: #{tpu_custom_call.1} parent=5 // pred_region
        %s277 = ssub.s32 %s22, 1
        %s278 = sand.u32 %s35, 1
        %s279 = scalar_lea.sflag [#allocation3], %s278
        %s280 = sand.u32 %s35, 1
        %s281 = smul.addr %s280, 8
        %s282 = scalar_lea.vmem [#allocation2], %s281
        // Predicated region
        $region45: #{tpu_custom_call.1} parent=43 // pred_check
          %p283 = pneg %p48
        $region46: #{tpu_custom_call.1} parent=43 // pred_check_branch
          %285 = sbr.rel (%p283) target = $region48
        $region47: #{tpu_custom_call.1} parent=43 // pred_region
          %286 = dma.done %s279, 128
        $region48: #{tpu_custom_call.1} parent=43 // pred_fallthru
          _
        %s287 = sand.u32 %s27, 1
        %s288 = scalar_lea.sflag [#allocation6], %s287
        %s289 = sand.u32 %s61, 1
        %s290 = smul.addr %s289, 8
        %s291 = scalar_lea.vmem [#allocation5], %s290
        // Predicated region
        $region49: #{tpu_custom_call.1} parent=43 // pred_check
          %p292 = pneg %p74
        $region50: #{tpu_custom_call.1} parent=43 // pred_check_branch
          %294 = sbr.rel (%p292) target = $region52
        $region51: #{tpu_custom_call.1} parent=43 // pred_region
          %295 = dma.done %s288, 128
        $region52: #{tpu_custom_call.1} parent=43 // pred_fallthru
          _
        // Predicated region
        $region53: #{tpu_custom_call.1} parent=43 // pred_check
          %p296 = pneg %p95
        $region54: #{tpu_custom_call.1} parent=43 // pred_check_branch
          %298 = sbr.rel (%p296) target = $region56
        $region55: #{tpu_custom_call.1} parent=43 // pred_region
          %299 = dma.done [#allocation6], 768
        $region56: #{tpu_custom_call.1} parent=43 // pred_fallthru
          _
        // Predicated region
        $region57: #{tpu_custom_call.1} parent=43 // pred_check
          %p300 = pneg %p116
        $region58: #{tpu_custom_call.1} parent=43 // pred_check_branch
          %302 = sbr.rel (%p300) target = $region60
        $region59: #{tpu_custom_call.1} parent=43 // pred_region
          %303 = dma.done [#allocation9], 2048
        $region60: #{tpu_custom_call.1} parent=43 // pred_fallthru
          _
        %s304 = sand.u32 %s35, 1
        %s305 = scalar_lea.sflag [#allocation3], %s304
        %s306 = sand.u32 %s35, 1
        %s307 = smul.addr %s306, 8
        %s308 = scalar_lea.vmem [#allocation2], %s307
        %p309 = pneg %p48
        %p310 = pneg %p45
        %s311 = sand.u32 %s27, 1
        %s312 = scalar_lea.sflag [#allocation6], %s311
        %s313 = sand.u32 %s61, 1
        %s314 = smul.addr %s313, 8
        %s315 = scalar_lea.vmem [#allocation5], %s314
        %p316 = pneg %p74
        %p317 = pneg %p71
        %p318 = pneg %p95
        %p319 = pneg %p92
        %p320 = pneg %p116
        %p321 = pneg %p113
        %p322 = pneg %p137
        %p323 = pneg %p134
        %p324 = pneg %p158
        %p325 = pneg %p155
        %p326 = pneg %p184
        %p327 = pneg %p181
        %s328 = sand.u32 %s171, 1
        %s329 = scalar_lea.sflag [#allocation4], %s328
        %s330 = sand.u32 %s171, 1
        %s331 = smul.addr %s330, 8
        %s332 = scalar_lea.vmem [#allocation10], %s331
        %v334 = vld [vmem:[%s282] sm:$0xff]
        %v335 = vpack.c.bf16 %v334, %v334
        %v336 = vld [vmem:[%s291] sm:$0xff]
        %v337 = vpack.c.bf16 %v336, %v336
        %v338 = vld [vmem:[#allocation7] sm:$0xf]
        %v339 = vld [vmem:[#allocation7 + $0x4] sm:$0xf]
        %v340 = vld [vmem:[#allocation7 + $0x8] sm:$0xf]
        %v341 = vld [vmem:[#allocation7 + $0xc] sm:$0xf]
        %v342 = vld [vmem:[#allocation7 + $0x10] sm:$0xf]
        %v343 = vld [vmem:[#allocation7 + $0x14] sm:$0xf]
        %v344 = vld [vmem:[#allocation7 + $0x18] sm:$0xf]
        %v345 = vld [vmem:[#allocation7 + $0x1c] sm:$0xf]
        %v354 = vunpack.c.l.b16 %v338
        %v355 = vunpack.c.l.b16 %v339
        %v356 = vunpack.c.l.b16 %v340
        %v357 = vunpack.c.l.b16 %v341
        %v358 = vunpack.c.l.b16 %v342
        %v359 = vunpack.c.l.b16 %v343
        %v360 = vunpack.c.l.b16 %v344
        %v361 = vunpack.c.l.b16 %v345
        %v362 = vpack.c.b16 %v355, %v354
        %v363 = vpack.c.b16 %v357, %v356
        %v364 = vpack.c.b16 %v359, %v358
        %v365 = vpack.c.b16 %v361, %v360
        %vm370 = vcmask 523264
        %v372 = vsel %vm370, %v335, 0
        %374 = vmatprep.subr.bf16.mxu0 0
        %375 = vmatpush1.bf16.msra.mxu0 0
        %376 = vmatprep.subr.bf16.mxu0 0
        %377 = vmatpush1.bf16.msra.mxu0 0
        %378 = vmatprep.subr.bf16.mxu0 0
        %379 = vmatpush1.bf16.msra.mxu0 0
        %380 = vmatprep.subr.bf16.mxu0 0
        %381 = vmatpush1.bf16.msra.mxu0 0
        %382 = vmatprep.subr.bf16.mxu0 0
        %383 = vmatpush1.bf16.msra.mxu0 %v365
        %384 = vmatprep.subr.bf16.mxu0 0
        %385 = vmatpush1.bf16.msra.mxu0 %v364
        %386 = vmatprep.subr.bf16.mxu0 0
        %387 = vmatpush1.bf16.msra.mxu0 %v363
        %388 = vmatprep.subr.bf16.mxu0 0
        %389 = vmatpush1.bf16.msra.mxu0 %v362
        %390 = vmatprep.subr.bf16.mxu0 0
        %391 = vmatpush2.bf16.msra.mxu0 0
        %392 = vmatprep.subr.bf16.mxu0 0
        %393 = vmatpush2.bf16.msra.mxu0 0
        %394 = vmatprep.subr.bf16.mxu0 0
        %395 = vmatpush2.bf16.msra.mxu0 0
        %396 = vmatprep.subr.bf16.mxu0 0
        %397 = vmatpush2.bf16.msra.mxu0 0
        %398 = vmatprep.subr.bf16.mxu0 0
        %399 = vmatpush2.bf16.msra.mxu0 0
        %400 = vmatprep.subr.bf16.mxu0 0
        %401 = vmatpush2.bf16.msra.mxu0 0
        %402 = vmatprep.subr.bf16.mxu0 0
        %403 = vmatpush2.bf16.msra.mxu0 0
        %404 = vmatprep.subr.bf16.mxu0 0
        %405 = vmatpush2.bf16.msra.mxu0 0
        %406 = vmatprep.mubr.bf16.mxu0 0
        %407 = vmatmul.mubr.bf16.gmra.mxu0 %v372
        %v408 = vpop.f32.mrf.mxu0
        %v409 = vadd.f32 0.0, %v408
        %v410 = vpop.f32.mrf.mxu0
        %v411 = vpop.f32.mrf.mxu0
        %v412 = vpop.f32.mrf.mxu0
        %413 = vdwg.mxu0
        %v414 = vld [vmem:[#allocation7 + $0x20] sm:$0xf]
        %v415 = vld [vmem:[#allocation7 + $0x24] sm:$0xf]
        %v416 = vld [vmem:[#allocation7 + $0x28] sm:$0xf]
        %v417 = vld [vmem:[#allocation7 + $0x2c] sm:$0xf]
        %v422 = vunpack.c.l.b16 %v414
        %v423 = vunpack.c.l.b16 %v415
        %v424 = vunpack.c.l.b16 %v416
        %v425 = vunpack.c.l.b16 %v417
        %v426 = vpack.c.b16 %v423, %v422
        %v427 = vpack.c.b16 %v425, %v424
        %vm430 = vcmask 261120
        %v432 = vsel %vm430, %v337, 0
        %434 = vmatprep.subr.bf16.mxu0 0
        %435 = vmatpush1.bf16.msra.mxu0 0
        %436 = vmatprep.subr.bf16.mxu0 0
        %437 = vmatpush1.bf16.msra.mxu0 0
        %438 = vmatprep.subr.bf16.mxu0 0
        %439 = vmatpush1.bf16.msra.mxu0 0
        %440 = vmatprep.subr.bf16.mxu0 0
        %441 = vmatpush1.bf16.msra.mxu0 0
        %442 = vmatprep.subr.bf16.mxu0 0
        %443 = vmatpush1.bf16.msra.mxu0 0
        %444 = vmatprep.subr.bf16.mxu0 0
        %445 = vmatpush1.bf16.msra.mxu0 0
        %446 = vmatprep.subr.bf16.mxu0 0
        %447 = vmatpush1.bf16.msra.mxu0 %v427
        %448 = vmatprep.subr.bf16.mxu0 0
        %449 = vmatpush1.bf16.msra.mxu0 %v426
        %450 = vmatprep.subr.bf16.mxu0 0
        %451 = vmatpush2.bf16.msra.mxu0 0
        %452 = vmatprep.subr.bf16.mxu0 0
        %453 = vmatpush2.bf16.msra.mxu0 0
        %454 = vmatprep.subr.bf16.mxu0 0
        %455 = vmatpush2.bf16.msra.mxu0 0
        %456 = vmatprep.subr.bf16.mxu0 0
        %457 = vmatpush2.bf16.msra.mxu0 0
        %458 = vmatprep.subr.bf16.mxu0 0
        %459 = vmatpush2.bf16.msra.mxu0 0
        %460 = vmatprep.subr.bf16.mxu0 0
        %461 = vmatpush2.bf16.msra.mxu0 0
        %462 = vmatprep.subr.bf16.mxu0 0
        %463 = vmatpush2.bf16.msra.mxu0 0
        %464 = vmatprep.subr.bf16.mxu0 0
        %465 = vmatpush2.bf16.msra.mxu0 0
        %466 = vmatprep.mubr.bf16.mxu0 0
        %467 = vmatmul.mubr.bf16.gmra.mxu0 %v432
        %v468 = vpop.f32.mrf.mxu0
        %v469 = vadd.f32 0.0, %v468
        %v470 = vpop.f32.mrf.mxu0
        %v471 = vpop.f32.mrf.mxu0
        %v472 = vpop.f32.mrf.mxu0
        %473 = vdwg.mxu0
        %v474 = vsub.f32 %v469, %v409
        %v475 = vld [vmem:[%s4] sm:$0x1]
        %v477 = vlaneseq
        %v478 = vshrl.u32 %v477, 7
        %v479 = vsub.s32 0, %v478
        %v480 = vrot.slane %v475, %v479
        %v482 = vadd.f32 %v474, %v480
        %v483 = vand.u32 2147483647, %v482
        %v484 = vpack.c.bf16 %v483, %v483
        %v485 = vadd.f32 %v469, %v409
        %v486 = vpack.c.bf16 %v485, %v485
        %v487 = vld [vmem:[#allocation8] sm:$0xf]
        %v488 = vld [vmem:[#allocation8 + $0x4] sm:$0xf]
        %v489 = vld [vmem:[#allocation8 + $0x8] sm:$0xf]
        %v490 = vld [vmem:[#allocation8 + $0xc] sm:$0xf]
        %v491 = vld [vmem:[#allocation8 + $0x10] sm:$0xf]
        %v492 = vld [vmem:[#allocation8 + $0x14] sm:$0xf]
        %v493 = vld [vmem:[#allocation8 + $0x18] sm:$0xf]
        %v494 = vld [vmem:[#allocation8 + $0x1c] sm:$0xf]
        %v495 = vld [vmem:[#allocation8 + $0x20] sm:$0xf]
        %v496 = vld [vmem:[#allocation8 + $0x24] sm:$0xf]
        %v497 = vld [vmem:[#allocation8 + $0x28] sm:$0xf]
        %v498 = vld [vmem:[#allocation8 + $0x2c] sm:$0xf]
        %v499 = vld [vmem:[#allocation8 + $0x30] sm:$0xf]
        %v500 = vld [vmem:[#allocation8 + $0x34] sm:$0xf]
        %v501 = vld [vmem:[#allocation8 + $0x38] sm:$0xf]
        %v502 = vld [vmem:[#allocation8 + $0x3c] sm:$0xf]
        %v503 = vld [vmem:[#allocation8 + $0x40] sm:$0xf]
        %v504 = vld [vmem:[#allocation8 + $0x44] sm:$0xf]
        %v505 = vld [vmem:[#allocation8 + $0x48] sm:$0xf]
        %v506 = vld [vmem:[#allocation8 + $0x4c] sm:$0xf]
        %v507 = vld [vmem:[#allocation8 + $0x50] sm:$0xf]
        %v508 = vld [vmem:[#allocation8 + $0x54] sm:$0xf]
        %v509 = vld [vmem:[#allocation8 + $0x58] sm:$0xf]
        %v510 = vld [vmem:[#allocation8 + $0x5c] sm:$0xf]
        %v511 = vld [vmem:[#allocation8 + $0x60] sm:$0xf]
        %v512 = vld [vmem:[#allocation8 + $0x64] sm:$0xf]
        %v513 = vld [vmem:[#allocation8 + $0x68] sm:$0xf]
        %v514 = vld [vmem:[#allocation8 + $0x6c] sm:$0xf]
        %v515 = vld [vmem:[#allocation8 + $0x70] sm:$0xf]
        %v516 = vld [vmem:[#allocation8 + $0x74] sm:$0xf]
        %v517 = vld [vmem:[#allocation8 + $0x78] sm:$0xf]
        %v518 = vld [vmem:[#allocation8 + $0x7c] sm:$0xf]
        %v535 = vunpack.c.l.b16 %v503
        %v536 = vunpack.c.l.b16 %v504
        %v537 = vunpack.c.l.b16 %v505
        %v538 = vunpack.c.l.b16 %v506
        %v539 = vunpack.c.l.b16 %v507
        %v540 = vunpack.c.l.b16 %v508
        %v541 = vunpack.c.l.b16 %v509
        %v542 = vunpack.c.l.b16 %v510
        %v543 = vunpack.c.l.b16 %v511
        %v544 = vunpack.c.l.b16 %v512
        %v545 = vunpack.c.l.b16 %v513
        %v546 = vunpack.c.l.b16 %v514
        %v547 = vunpack.c.l.b16 %v515
        %v548 = vunpack.c.l.b16 %v516
        %v549 = vunpack.c.l.b16 %v517
        %v550 = vunpack.c.l.b16 %v518
        %v551 = vpack.c.b16 %v536, %v535
        %v552 = vpack.c.b16 %v538, %v537
        %v553 = vpack.c.b16 %v540, %v539
        %v554 = vpack.c.b16 %v542, %v541
        %v555 = vpack.c.b16 %v544, %v543
        %v556 = vpack.c.b16 %v546, %v545
        %v557 = vpack.c.b16 %v548, %v547
        %v558 = vpack.c.b16 %v550, %v549
        %567 = vmatprep.subr.bf16.mxu0 0
        %568 = vmatpush1.bf16.msra.mxu0 %v558
        %569 = vmatprep.subr.bf16.mxu0 0
        %570 = vmatpush1.bf16.msra.mxu0 %v557
        %571 = vmatprep.subr.bf16.mxu0 0
        %572 = vmatpush1.bf16.msra.mxu0 %v556
        %573 = vmatprep.subr.bf16.mxu0 0
        %574 = vmatpush1.bf16.msra.mxu0 %v555
        %575 = vmatprep.subr.bf16.mxu0 0
        %576 = vmatpush1.bf16.msra.mxu0 %v554
        %577 = vmatprep.subr.bf16.mxu0 0
        %578 = vmatpush1.bf16.msra.mxu0 %v553
        %579 = vmatprep.subr.bf16.mxu0 0
        %580 = vmatpush1.bf16.msra.mxu0 %v552
        %581 = vmatprep.subr.bf16.mxu0 0
        %582 = vmatpush1.bf16.msra.mxu0 %v551
        %583 = vmatprep.subr.bf16.mxu0 0
        %584 = vmatpush2.bf16.msra.mxu0 0
        %585 = vmatprep.subr.bf16.mxu0 0
        %586 = vmatpush2.bf16.msra.mxu0 0
        %587 = vmatprep.subr.bf16.mxu0 0
        %588 = vmatpush2.bf16.msra.mxu0 0
        %589 = vmatprep.subr.bf16.mxu0 0
        %590 = vmatpush2.bf16.msra.mxu0 0
        %591 = vmatprep.subr.bf16.mxu0 0
        %592 = vmatpush2.bf16.msra.mxu0 0
        %593 = vmatprep.subr.bf16.mxu0 0
        %594 = vmatpush2.bf16.msra.mxu0 0
        %595 = vmatprep.subr.bf16.mxu0 0
        %596 = vmatpush2.bf16.msra.mxu0 0
        %597 = vmatprep.subr.bf16.mxu0 0
        %598 = vmatpush2.bf16.msra.mxu0 0
        %599 = vmatprep.mubr.bf16.mxu0 0
        %600 = vmatmul.mubr.bf16.gmra.mxu0 %v486
        %v601 = vpop.f32.mrf.mxu0
        %v602 = vadd.f32 0.0, %v601
        %v603 = vpop.f32.mrf.mxu0
        %v604 = vpop.f32.mrf.mxu0
        %v605 = vpop.f32.mrf.mxu0
        %606 = vdwg.mxu0
        %v623 = vunpack.c.l.b16 %v487
        %v624 = vunpack.c.l.b16 %v488
        %v625 = vunpack.c.l.b16 %v489
        %v626 = vunpack.c.l.b16 %v490
        %v627 = vunpack.c.l.b16 %v491
        %v628 = vunpack.c.l.b16 %v492
        %v629 = vunpack.c.l.b16 %v493
        %v630 = vunpack.c.l.b16 %v494
        %v631 = vunpack.c.l.b16 %v495
        %v632 = vunpack.c.l.b16 %v496
        %v633 = vunpack.c.l.b16 %v497
        %v634 = vunpack.c.l.b16 %v498
        %v635 = vunpack.c.l.b16 %v499
        %v636 = vunpack.c.l.b16 %v500
        %v637 = vunpack.c.l.b16 %v501
        %v638 = vunpack.c.l.b16 %v502
        %v639 = vpack.c.b16 %v624, %v623
        %v640 = vpack.c.b16 %v626, %v625
        %v641 = vpack.c.b16 %v628, %v627
        %v642 = vpack.c.b16 %v630, %v629
        %v643 = vpack.c.b16 %v632, %v631
        %v644 = vpack.c.b16 %v634, %v633
        %v645 = vpack.c.b16 %v636, %v635
        %v646 = vpack.c.b16 %v638, %v637
        %655 = vmatprep.subr.bf16.mxu0 0
        %656 = vmatpush1.bf16.msra.mxu0 %v646
        %657 = vmatprep.subr.bf16.mxu0 0
        %658 = vmatpush1.bf16.msra.mxu0 %v645
        %659 = vmatprep.subr.bf16.mxu0 0
        %660 = vmatpush1.bf16.msra.mxu0 %v644
        %661 = vmatprep.subr.bf16.mxu0 0
        %662 = vmatpush1.bf16.msra.mxu0 %v643
        %663 = vmatprep.subr.bf16.mxu0 0
        %664 = vmatpush1.bf16.msra.mxu0 %v642
        %665 = vmatprep.subr.bf16.mxu0 0
        %666 = vmatpush1.bf16.msra.mxu0 %v641
        %667 = vmatprep.subr.bf16.mxu0 0
        %668 = vmatpush1.bf16.msra.mxu0 %v640
        %669 = vmatprep.subr.bf16.mxu0 0
        %670 = vmatpush1.bf16.msra.mxu0 %v639
        %671 = vmatprep.subr.bf16.mxu0 0
        %672 = vmatpush2.bf16.msra.mxu0 0
        %673 = vmatprep.subr.bf16.mxu0 0
        %674 = vmatpush2.bf16.msra.mxu0 0
        %675 = vmatprep.subr.bf16.mxu0 0
        %676 = vmatpush2.bf16.msra.mxu0 0
        %677 = vmatprep.subr.bf16.mxu0 0
        %678 = vmatpush2.bf16.msra.mxu0 0
        %679 = vmatprep.subr.bf16.mxu0 0
        %680 = vmatpush2.bf16.msra.mxu0 0
        %681 = vmatprep.subr.bf16.mxu0 0
        %682 = vmatpush2.bf16.msra.mxu0 0
        %683 = vmatprep.subr.bf16.mxu0 0
        %684 = vmatpush2.bf16.msra.mxu0 0
        %685 = vmatprep.subr.bf16.mxu0 0
        %686 = vmatpush2.bf16.msra.mxu0 0
        %687 = vmatprep.mubr.bf16.mxu0 0
        %688 = vmatmul.mubr.bf16.gmra.mxu0 %v484
        %v689 = vpop.f32.mrf.mxu0
        %v690 = vadd.f32 %v602, %v689
        %v691 = vpop.f32.mrf.mxu0
        %v692 = vpop.f32.mrf.mxu0
        %v693 = vpop.f32.mrf.mxu0
        %694 = vdwg.mxu0
        %v695 = vld [vmem:[%s5] sm:$0x1]
        %v697 = vlaneseq
        %v698 = vshrl.u32 %v697, 7
        %v699 = vsub.s32 0, %v698
        %v700 = vrot.slane %v695, %v699
        %v702 = vadd.f32 %v690, %v700
        %703 = vst [vmem:[%s332] sm:$0xff] %v702
        %s704 = sand.u32 %s171, 1
        %s705 = scalar_lea.sflag [#allocation4], %s704
        %s706 = sand.u32 %s171, 1
        %s707 = smul.addr %s706, 8
        %s708 = scalar_lea.vmem [#allocation10], %s707
        // Predicated region
        $region61: #{tpu_custom_call.1} parent=43 // pred_check
          %p709 = pneg %p181
        $region62: #{tpu_custom_call.1} parent=43 // pred_check_branch
          %711 = sbr.rel (%p709) target = $region64
        $region63: #{tpu_custom_call.1} parent=43 // pred_region
          %s713 = ssub.s32 128, 128
          %714 = vsyncadd %s705, %s713
          %s715 = smul.addr %s27, 128
          %s716 = scalar_lea.hbm %s6, %s715
          %s718 = sshll.u32 %s708, 4
          %s719 = int_to_ptr.vmem [resolvable:$true] %s718
          %721 = dma.vmem_to_hbm [thread:$0]  %s719, 128, %s716, %s705
        $region64: #{tpu_custom_call.1} parent=43 // pred_fallthru
          _
      $region44: #{tpu_custom_call.1} parent=5 // pred_fallthru
        _
      %p722 = scmp.le.s32.totalorder 2, %s22
      // Predicated region
      $region65: #{tpu_custom_call.1} parent=5 // pred_check
        %p723 = pneg %p722
      $region66: #{tpu_custom_call.1} parent=5 // pred_check_branch
        %725 = sbr.rel (%p723) target = $region68
      $region67: #{tpu_custom_call.1} parent=5 // pred_region
        %s726 = ssub.s32 %s22, 2
        // Predicated region
        $region69: #{tpu_custom_call.1} parent=67 // pred_check
          %p727 = pneg %p187
        $region70: #{tpu_custom_call.1} parent=67 // pred_check_branch
          %729 = sbr.rel (%p727) target = $region72
        $region71: #{tpu_custom_call.1} parent=67 // pred_region
          %s730 = sand.u32 %s172, 1
          %s731 = scalar_lea.sflag [#allocation4], %s730
          %s732 = sand.u32 %s172, 1
          %s733 = smul.addr %s732, 8
          %s734 = scalar_lea.vmem [#allocation10], %s733
          %735 = dma.done %s731, 128
        $region72: #{tpu_custom_call.1} parent=67 // pred_fallthru
          _
      $region68: #{tpu_custom_call.1} parent=5 // pred_fallthru
        _
    $region6: #{tpu_custom_call.1} parent=1 // loop_footer
      %s26 = sadd.s32 1, %s22
    $region7: #{tpu_custom_call.1} parent=1 // loop_footer_branch
      %21 = sbr.rel target = $region3
    $region8: #{tpu_custom_call.1} parent=1 // loop_exit
      _
    %736 = vsyncpa [#allocation3], 1
    %s737 = scalar_lea.sflag [#allocation3], 1
    %738 = vsyncpa %s737, 1
    %739 = vsyncpa [#allocation6], 1
    %s740 = scalar_lea.sflag [#allocation6], 1
    %741 = vsyncpa %s740, 1
    %742 = vsyncpa [#allocation9], 1
    %743 = vsyncpa [#allocation4], 1
    %s744 = scalar_lea.sflag [#allocation4], 1
    %745 = vsyncpa %s744, 1

// kernel: tpu_custom_call.1
$region0: #{tpu_custom_call.1}
  #allocation0 [shape = 'u32[]', space=smem, size = 0x4, offset = 0x4, fixed_abs, tag = 'smem constant byte address 0x4 - core index']
  #allocation1 [shape = 'u32[144,128]{1,0:T(1,128)}', space=vmem, size = 0x12000, scoped, tag = 'internal scratch']
  %s0 = inlined_call_operand.hbm [shape: f32[16,64], index: 0, kind: input, shape index: {}]
  %s1 = inlined_call_operand.hbm [shape: f32[16,32], index: 1, kind: input, shape index: {}]
  %s2 = inlined_call_operand.hbm [shape: bf16[96,128], index: 2, kind: input, shape index: {}]
  %s3 = inlined_call_operand.hbm [shape: bf16[256,128], index: 3, kind: input, shape index: {}]
  %s4 = inlined_call_operand.vmem [shape: f32[1,128], index: 4, kind: input, shape index: {}]
  %s5 = inlined_call_operand.vmem [shape: f32[1,128], index: 5, kind: input, shape index: {}]
  %s6 = inlined_call_operand.hbm [shape: f32[16,128], index: 6, kind: output, shape index: {}]
  %s7 = sld [smem:[#allocation0]]
  $region73: #{tpu_custom_call.1} parent=0
    _
  %s9 = ssub.s32 1, %s7
  %s10 = scalar_select 0, %s9, %s7
  $region1: #{tpu_custom_call.1} parent=0
    #allocation2 [shape = 'u8[8192]{0}', space=vmem, size = 0x2000, scoped, tag = 'input window, operand 0']
    #allocation3 [shape = 's32[2]{0}', space=sflag, size = 0x8, scoped, tag = 'scoped memory for tpu_custom_call.1']
    #allocation4 [shape = 's32[2]{0}', space=sflag, size = 0x8, scoped, tag = 'scoped memory for tpu_custom_call.1']
    #allocation5 [shape = 'u8[8192]{0}', space=vmem, size = 0x2000, scoped, tag = 'input window, operand 1']
    #allocation6 [shape = 's32[2]{0}', space=sflag, size = 0x8, scoped, tag = 'scoped memory for tpu_custom_call.1']
    #allocation7 [shape = 'u8[24576]{0}', space=vmem, size = 0x6000, scoped, tag = 'input window, operand 2, single buffered']
    #allocation8 [shape = 'u8[65536]{0}', space=vmem, size = 0x10000, scoped, tag = 'input window, operand 3, single buffered']
    #allocation9 [shape = 's32[1]{0}', space=sflag, size = 0x4, scoped, tag = 'scoped memory for tpu_custom_call.1']
    #allocation10 [shape = 'u8[8192]{0}', space=vmem, size = 0x2000, scoped, tag = 'output window, operand 0']
    %11 = vsyncpa [#allocation3], 0
    %s12 = scalar_lea.sflag [#allocation3], 1
    %13 = vsyncpa %s12, 0
    %14 = vsyncpa [#allocation6], 0
    %s15 = scalar_lea.sflag [#allocation6], 1
    %16 = vsyncpa %s15, 0
    %17 = vsyncpa [#allocation9], 0
    %18 = vsyncpa [#allocation4], 0
    %s19 = scalar_lea.sflag [#allocation4], 1
    %20 = vsyncpa %s19, 0
    loop: start=0, step=1, limit=4
    $region2: #{tpu_custom_call.1} parent=1 // loop_pre_header
      _
    $region3: #{tpu_custom_call.1} parent=1 // loop_header
      %s22 = sphi 0, %s26
      %p23 = scmp.ge.s32.totalorder %s22, 4
      %s32 = sphi 0, %s34
      %s35 = sphi 0, %s32
      %s36 = sphi 0, %s35
      %s52 = sphi 0, %s36
      %s58 = sphi 0, %s60
      %s61 = sphi 0, %s58
      %s62 = sphi 0, %s61
      %s78 = sphi 0, %s62
      %s82 = sphi 0, %s82
      %s84 = sphi 0, %s82
      %s85 = sphi 0, %s84
      %s99 = sphi 0, %s85
      %s103 = sphi 0, %s103
      %s105 = sphi 0, %s103
      %s106 = sphi 0, %s105
      %s120 = sphi 0, %s106
      %s124 = sphi 0, %s124
      %s126 = sphi 0, %s124
      %s127 = sphi 0, %s126
      %s141 = sphi 0, %s127
      %s145 = sphi 0, %s145
      %s147 = sphi 0, %s145
      %s148 = sphi 0, %s147
      %s162 = sphi 0, %s148
      %s168 = sphi 0, %s170
      %s171 = sphi 0, %s168
      %s172 = sphi 0, %s171
      %s188 = sphi 0, %s172
    $region4: #{tpu_custom_call.1} parent=1 // loop_header_branch
      %25 = sbr.rel (%p23) target = $region8
    $region5: #{tpu_custom_call.1} parent=1 // loop_body
      %s27 = ssub.s32 %s22, 1
      %s28 = ssub.s32 %s22, 2
      %s29 = sadd.s32 %s22, 1
      %s30 = ssub.s32 %s22, %s29
      %p31 = scmp.eq.s32.totalorder %s30, 0
      %s33 = sadd.s32 %s32, 1
      %s34 = scalar_select %p31, %s32, %s33
      %p37 = pneg %p31
      %p38 = scmp.eq.s32.totalorder %s22, 1
      %p39 = por %p37, %p38
      %p40 = scmp.ne.s32.totalorder %s32, %s35
      %p41 = scmp.eq.s32.totalorder %s22, 0
      %p42 = por %p40, %p41
      %p43 = scmp.ne.s32.totalorder %s32, %s35
      %p44 = scmp.eq.s32.totalorder %s27, 1
      %p45 = por %p43, %p44
      %p46 = scmp.ne.s32.totalorder %s35, %s36
      %p47 = scmp.eq.s32.totalorder %s27, 0
      %p48 = por %p46, %p47
      %p49 = scmp.ne.s32.totalorder %s35, %s36
      %p50 = scmp.eq.s32.totalorder %s28, 1
      %p51 = por %p49, %p50
      %p53 = scmp.ne.s32.totalorder %s36, %s52
      %p54 = scmp.eq.s32.totalorder %s28, 0
      %p55 = por %p53, %p54
      %s56 = ssub.s32 %s22, %s29
      %p57 = scmp.eq.s32.totalorder %s56, 0
      %s59 = sadd.s32 %s58, 1
      %s60 = scalar_select %p57, %s58, %s59
      %p63 = pneg %p57
      %p64 = scmp.eq.s32.totalorder %s22, 1
      %p65 = por %p63, %p64
      %p66 = scmp.ne.s32.totalorder %s58, %s61
      %p67 = scmp.eq.s32.totalorder %s22, 0
      %p68 = por %p66, %p67
      %p69 = scmp.ne.s32.totalorder %s58, %s61
      %p70 = scmp.eq.s32.totalorder %s27, 1
      %p71 = por %p69, %p70
      %p72 = scmp.ne.s32.totalorder %s61, %s62
      %p73 = scmp.eq.s32.totalorder %s27, 0
      %p74 = por %p72, %p73
      %p75 = scmp.ne.s32.totalorder %s61, %s62
      %p76 = scmp.eq.s32.totalorder %s28, 1
      %p77 = por %p75, %p76
      %p79 = scmp.ne.s32.totalorder %s62, %s78
      %p80 = scmp.eq.s32.totalorder %s28, 0
      %p81 = por %p79, %p80
      %s83 = sadd.s32 %s82, 1
      %p86 = scmp.eq.s32.totalorder %s22, 1
      %p87 = scmp.ne.s32.totalorder %s82, %s84
      %p88 = scmp.eq.s32.totalorder %s22, 0
      %p89 = por %p87, %p88
      %p90 = scmp.ne.s32.totalorder %s82, %s84
      %p91 = scmp.eq.s32.totalorder %s27, 1
      %p92 = por %p90, %p91
      %p93 = scmp.ne.s32.totalorder %s84, %s85
      %p94 = scmp.eq.s32.totalorder %s27, 0
      %p95 = por %p93, %p94
      %p96 = scmp.ne.s32.totalorder %s84, %s85
      %p97 = scmp.eq.s32.totalorder %s28, 1
      %p98 = por %p96, %p97
      %p100 = scmp.ne.s32.totalorder %s85, %s99
      %p101 = scmp.eq.s32.totalorder %s28, 0
      %p102 = por %p100, %p101
      %s104 = sadd.s32 %s103, 1
      %p107 = scmp.eq.s32.totalorder %s22, 1
      %p108 = scmp.ne.s32.totalorder %s103, %s105
      %p109 = scmp.eq.s32.totalorder %s22, 0
      %p110 = por %p108, %p109
      %p111 = scmp.ne.s32.totalorder %s103, %s105
      %p112 = scmp.eq.s32.totalorder %s27, 1
      %p113 = por %p111, %p112
      %p114 = scmp.ne.s32.totalorder %s105, %s106
      %p115 = scmp.eq.s32.totalorder %s27, 0
      %p116 = por %p114, %p115
      %p117 = scmp.ne.s32.totalorder %s105, %s106
      %p118 = scmp.eq.s32.totalorder %s28, 1
      %p119 = por %p117, %p118
      %p121 = scmp.ne.s32.totalorder %s106, %s120
      %p122 = scmp.eq.s32.totalorder %s28, 0
      %p123 = por %p121, %p122
      %s125 = sadd.s32 %s124, 1
      %p128 = scmp.eq.s32.totalorder %s22, 1
      %p129 = scmp.ne.s32.totalorder %s124, %s126
      %p130 = scmp.eq.s32.totalorder %s22, 0
      %p131 = por %p129, %p130
      %p132 = scmp.ne.s32.totalorder %s124, %s126
      %p133 = scmp.eq.s32.totalorder %s27, 1
      %p134 = por %p132, %p133
      %p135 = scmp.ne.s32.totalorder %s126, %s127
      %p136 = scmp.eq.s32.totalorder %s27, 0
      %p137 = por %p135, %p136
      %p138 = scmp.ne.s32.totalorder %s126, %s127
      %p139 = scmp.eq.s32.totalorder %s28, 1
      %p140 = por %p138, %p139
      %p142 = scmp.ne.s32.totalorder %s127, %s141
      %p143 = scmp.eq.s32.totalorder %s28, 0
      %p144 = por %p142, %p143
      %s146 = sadd.s32 %s145, 1
      %p149 = scmp.eq.s32.totalorder %s22, 1
      %p150 = scmp.ne.s32.totalorder %s145, %s147
      %p151 = scmp.eq.s32.totalorder %s22, 0
      %p152 = por %p150, %p151
      %p153 = scmp.ne.s32.totalorder %s145, %s147
      %p154 = scmp.eq.s32.totalorder %s27, 1
      %p155 = por %p153, %p154
      %p156 = scmp.ne.s32.totalorder %s147, %s148
      %p157 = scmp.eq.s32.totalorder %s27, 0
      %p158 = por %p156, %p157
      %p159 = scmp.ne.s32.totalorder %s147, %s148
      %p160 = scmp.eq.s32.totalorder %s28, 1
      %p161 = por %p159, %p160
      %p163 = scmp.ne.s32.totalorder %s148, %s162
      %p164 = scmp.eq.s32.totalorder %s28, 0
      %p165 = por %p163, %p164
      %s166 = ssub.s32 %s22, %s29
      %p167 = scmp.eq.s32.totalorder %s166, 0
      %s169 = sadd.s32 %s168, 1
      %s170 = scalar_select %p167, %s168, %s169
      %p173 = pneg %p167
      %p174 = scmp.eq.s32.totalorder %s22, 1
      %p175 = por %p173, %p174
      %p176 = scmp.ne.s32.totalorder %s168, %s171
      %p177 = scmp.eq.s32.totalorder %s22, 0
      %p178 = por %p176, %p177
      %p179 = scmp.ne.s32.totalorder %s168, %s171
      %p180 = scmp.eq.s32.totalorder %s27, 1
      %p181 = por %p179, %p180
      %p182 = scmp.ne.s32.totalorder %s171, %s172
      %p183 = scmp.eq.s32.totalorder %s27, 0
      %p184 = por %p182, %p183
      %p185 = scmp.ne.s32.totalorder %s171, %s172
      %p186 = scmp.eq.s32.totalorder %s28, 1
      %p187 = por %p185, %p186
      %p189 = scmp.ne.s32.totalorder %s172, %s188
      %p190 = scmp.eq.s32.totalorder %s28, 0
      %p191 = por %p189, %p190
      %p192 = scmp.le.s32.totalorder 1, %s22
      %p193 = scmp.lt.s32.totalorder %s22, 3
      %p194 = pnand %p192, %p193
      %p195 = pneg %p194
      // Predicated region
      $region9: #{tpu_custom_call.1} parent=5 // pred_check
        _
      $region10: #{tpu_custom_call.1} parent=5 // pred_check_branch
        %197 = sbr.rel (%p194) target = $region12
      $region11: #{tpu_custom_call.1} parent=5 // pred_region
        %s198 = ssub.s32 %s22, 1
        // Predicated region
        $region13: #{tpu_custom_call.1} parent=11 // pred_check
          %p199 = pneg %p95
        $region14: #{tpu_custom_call.1} parent=11 // pred_check_branch
          %201 = sbr.rel (%p199) target = $region16
        $region15: #{tpu_custom_call.1} parent=11 // pred_region
          %s203 = ssub.s32 768, 768
          %204 = vsyncadd [#allocation6], %s203
          %s205 = sshll.u32 [#allocation7], 4
          %s206 = int_to_ptr.vmem [resolvable:$true] %s205
          %211 = dma.hbm_to_vmem [thread:$0]  %s2, 768, %s206, [#allocation6], 64, 64, 4
        $region16: #{tpu_custom_call.1} parent=11 // pred_fallthru
          _
        // Predicated region
        $region17: #{tpu_custom_call.1} parent=11 // pred_check
          %p212 = pneg %p116
        $region18: #{tpu_custom_call.1} parent=11 // pred_check_branch
          %214 = sbr.rel (%p212) target = $region20
        $region19: #{tpu_custom_call.1} parent=11 // pred_region
          %s216 = ssub.s32 2048, 2048
          %217 = vsyncadd [#allocation9], %s216
          %s218 = sshll.u32 [#allocation8], 4
          %s219 = int_to_ptr.vmem [resolvable:$true] %s218
          %224 = dma.hbm_to_vmem [thread:$0]  %s3, 2048, %s219, [#allocation9], 64, 64, 4
        $region20: #{tpu_custom_call.1} parent=11 // pred_fallthru
          _
        // Predicated region
        $region21: #{tpu_custom_call.1} parent=11 // pred_check
          %p225 = pneg %p137
        $region22: #{tpu_custom_call.1} parent=11 // pred_check_branch
          %227 = sbr.rel (%p225) target = $region24
        $region23: #{tpu_custom_call.1} parent=11 // pred_region
          _
        $region24: #{tpu_custom_call.1} parent=11 // pred_fallthru
          _
        // Predicated region
        $region25: #{tpu_custom_call.1} parent=11 // pred_check
          %p228 = pneg %p158
        $region26: #{tpu_custom_call.1} parent=11 // pred_check_branch
          %230 = sbr.rel (%p228) target = $region28
        $region27: #{tpu_custom_call.1} parent=11 // pred_region
          _
        $region28: #{tpu_custom_call.1} parent=11 // pred_fallthru
          _
      $region12: #{tpu_custom_call.1} parent=5 // pred_fallthru
        _
      %p231 = scmp.lt.s32.totalorder %s22, 2
      // Predicated region
      $region29: #{tpu_custom_call.1} parent=5 // pred_check
        %p232 = pneg %p231
      $region30: #{tpu_custom_call.1} parent=5 // pred_check_branch
        %234 = sbr.rel (%p232) target = $region32
      $region31: #{tpu_custom_call.1} parent=5 // pred_region
        // Predicated region
        $region33: #{tpu_custom_call.1} parent=31 // pred_check
          %p235 = pneg %p42
        $region34: #{tpu_custom_call.1} parent=31 // pred_check_branch
          %237 = sbr.rel (%p235) target = $region36
        $region35: #{tpu_custom_call.1} parent=31 // pred_region
          %s238 = sand.u32 %s32, 1
          %s239 = scalar_lea.sflag [#allocation3], %s238
          %s240 = sand.u32 %s32, 1
          %s241 = smul.addr %s240, 8
          %s242 = scalar_lea.vmem [#allocation2], %s241
          %s244 = ssub.s32 128, 128
          %245 = vsyncadd %s239, %s244
          %s246 = smul.addr %s22, 128
          %s247 = scalar_lea.hbm %s0, %s246
          %s249 = sshll.u32 %s242, 4
          %s250 = int_to_ptr.vmem [resolvable:$true] %s249
          %252 = dma.hbm_to_vmem [thread:$0]  %s247, 128, %s250, %s239
        $region36: #{tpu_custom_call.1} parent=31 // pred_fallthru
          _
        // Predicated region
        $region37: #{tpu_custom_call.1} parent=31 // pred_check
          %p253 = pneg %p68
        $region38: #{tpu_custom_call.1} parent=31 // pred_check_branch
          %255 = sbr.rel (%p253) target = $region40
        $region39: #{tpu_custom_call.1} parent=31 // pred_region
          %s256 = sand.u32 %s22, 1
          %s257 = scalar_lea.sflag [#allocation6], %s256
          %s258 = sand.u32 %s58, 1
          %s259 = smul.addr %s258, 8
          %s260 = scalar_lea.vmem [#allocation5], %s259
          %s262 = ssub.s32 128, 128
          %263 = vsyncadd %s257, %s262
          %s264 = smul.addr %s22, 128
          %s265 = scalar_lea.hbm %s1, %s264
          %s267 = sshll.u32 %s260, 4
          %s268 = int_to_ptr.vmem [resolvable:$true] %s267
          %270 = dma.hbm_to_vmem [thread:$0]  %s265, 128, %s268, %s257
        $region40: #{tpu_custom_call.1} parent=31 // pred_fallthru
          _
      $region32: #{tpu_custom_call.1} parent=5 // pred_fallthru
        _
      %p271 = scmp.le.s32.totalorder 1, %s22
      %p272 = scmp.lt.s32.totalorder %s22, 3
      %p273 = pnand %p271, %p272
      %p274 = pneg %p273
      // Predicated region
      $region41: #{tpu_custom_call.1} parent=5 // pred_check
        _
      $region42: #{tpu_custom_call.1} parent=5 // pred_check_branch
        %276 = sbr.rel (%p273) target = $region44
      $region43: #{tpu_custom_call.1} parent=5 // pred_region
        %s277 = ssub.s32 %s22, 1
        %s278 = sand.u32 %s35, 1
        %s279 = scalar_lea.sflag [#allocation3], %s278
        %s280 = sand.u32 %s35, 1
        %s281 = smul.addr %s280, 8
        %s282 = scalar_lea.vmem [#allocation2], %s281
        // Predicated region
        $region45: #{tpu_custom_call.1} parent=43 // pred_check
          %p283 = pneg %p48
        $region46: #{tpu_custom_call.1} parent=43 // pred_check_branch
          %285 = sbr.rel (%p283) target = $region48
        $region47: #{tpu_custom_call.1} parent=43 // pred_region
          %286 = dma.done %s279, 128
        $region48: #{tpu_custom_call.1} parent=43 // pred_fallthru
          _
        %s287 = sand.u32 %s27, 1
        %s288 = scalar_lea.sflag [#allocation6], %s287
        %s289 = sand.u32 %s61, 1
        %s290 = smul.addr %s289, 8
        %s291 = scalar_lea.vmem [#allocation5], %s290
        // Predicated region
        $region49: #{tpu_custom_call.1} parent=43 // pred_check
          %p292 = pneg %p74
        $region50: #{tpu_custom_call.1} parent=43 // pred_check_branch
          %294 = sbr.rel (%p292) target = $region52
        $region51: #{tpu_custom_call.1} parent=43 // pred_region
          %295 = dma.done %s288, 128
        $region52: #{tpu_custom_call.1} parent=43 // pred_fallthru
          _
        // Predicated region
        $region53: #{tpu_custom_call.1} parent=43 // pred_check
          %p296 = pneg %p95
        $region54: #{tpu_custom_call.1} parent=43 // pred_check_branch
          %298 = sbr.rel (%p296) target = $region56
        $region55: #{tpu_custom_call.1} parent=43 // pred_region
          %299 = dma.done [#allocation6], 768
        $region56: #{tpu_custom_call.1} parent=43 // pred_fallthru
          _
        // Predicated region
        $region57: #{tpu_custom_call.1} parent=43 // pred_check
          %p300 = pneg %p116
        $region58: #{tpu_custom_call.1} parent=43 // pred_check_branch
          %302 = sbr.rel (%p300) target = $region60
        $region59: #{tpu_custom_call.1} parent=43 // pred_region
          %303 = dma.done [#allocation9], 2048
        $region60: #{tpu_custom_call.1} parent=43 // pred_fallthru
          _
        %s304 = sand.u32 %s35, 1
        %s305 = scalar_lea.sflag [#allocation3], %s304
        %s306 = sand.u32 %s35, 1
        %s307 = smul.addr %s306, 8
        %s308 = scalar_lea.vmem [#allocation2], %s307
        %p309 = pneg %p48
        %p310 = pneg %p45
        %s311 = sand.u32 %s27, 1
        %s312 = scalar_lea.sflag [#allocation6], %s311
        %s313 = sand.u32 %s61, 1
        %s314 = smul.addr %s313, 8
        %s315 = scalar_lea.vmem [#allocation5], %s314
        %p316 = pneg %p74
        %p317 = pneg %p71
        %p318 = pneg %p95
        %p319 = pneg %p92
        %p320 = pneg %p116
        %p321 = pneg %p113
        %p322 = pneg %p137
        %p323 = pneg %p134
        %p324 = pneg %p158
        %p325 = pneg %p155
        %p326 = pneg %p184
        %p327 = pneg %p181
        %s328 = sand.u32 %s171, 1
        %s329 = scalar_lea.sflag [#allocation4], %s328
        %s330 = sand.u32 %s171, 1
        %s331 = smul.addr %s330, 8
        %s332 = scalar_lea.vmem [#allocation10], %s331
        %v334 = vld [vmem:[%s282] sm:$0xff]
        %v335 = vpack.c.bf16 %v334, %v334
        %v336 = vld [vmem:[%s291] sm:$0xff]
        %v337 = vpack.c.bf16 %v336, %v336
        %v338 = vld [vmem:[#allocation7] sm:$0xf]
        %v339 = vld [vmem:[#allocation7 + $0x4] sm:$0xf]
        %v340 = vld [vmem:[#allocation7 + $0x8] sm:$0xf]
        %v341 = vld [vmem:[#allocation7 + $0xc] sm:$0xf]
        %v342 = vld [vmem:[#allocation7 + $0x10] sm:$0xf]
        %v343 = vld [vmem:[#allocation7 + $0x14] sm:$0xf]
        %v344 = vld [vmem:[#allocation7 + $0x18] sm:$0xf]
        %v345 = vld [vmem:[#allocation7 + $0x1c] sm:$0xf]
        %v354 = vunpack.c.l.b16 %v338
        %v355 = vunpack.c.l.b16 %v339
        %v356 = vunpack.c.l.b16 %v340
        %v357 = vunpack.c.l.b16 %v341
        %v358 = vunpack.c.l.b16 %v342
        %v359 = vunpack.c.l.b16 %v343
        %v360 = vunpack.c.l.b16 %v344
        %v361 = vunpack.c.l.b16 %v345
        %v362 = vpack.c.b16 %v355, %v354
        %v363 = vpack.c.b16 %v357, %v356
        %v364 = vpack.c.b16 %v359, %v358
        %v365 = vpack.c.b16 %v361, %v360
        %vm370 = vcmask 523264
        %v372 = vsel %vm370, %v335, 0
        %374 = vmatprep.subr.bf16.mxu0 0
        %375 = vmatpush1.bf16.msra.mxu0 0
        %376 = vmatprep.subr.bf16.mxu0 0
        %377 = vmatpush1.bf16.msra.mxu0 0
        %378 = vmatprep.subr.bf16.mxu0 0
        %379 = vmatpush1.bf16.msra.mxu0 0
        %380 = vmatprep.subr.bf16.mxu0 0
        %381 = vmatpush1.bf16.msra.mxu0 0
        %382 = vmatprep.subr.bf16.mxu0 0
        %383 = vmatpush1.bf16.msra.mxu0 %v365
        %384 = vmatprep.subr.bf16.mxu0 0
        %385 = vmatpush1.bf16.msra.mxu0 %v364
        %386 = vmatprep.subr.bf16.mxu0 0
        %387 = vmatpush1.bf16.msra.mxu0 %v363
        %388 = vmatprep.subr.bf16.mxu0 0
        %389 = vmatpush1.bf16.msra.mxu0 %v362
        %390 = vmatprep.subr.bf16.mxu0 0
        %391 = vmatpush2.bf16.msra.mxu0 0
        %392 = vmatprep.subr.bf16.mxu0 0
        %393 = vmatpush2.bf16.msra.mxu0 0
        %394 = vmatprep.subr.bf16.mxu0 0
        %395 = vmatpush2.bf16.msra.mxu0 0
        %396 = vmatprep.subr.bf16.mxu0 0
        %397 = vmatpush2.bf16.msra.mxu0 0
        %398 = vmatprep.subr.bf16.mxu0 0
        %399 = vmatpush2.bf16.msra.mxu0 0
        %400 = vmatprep.subr.bf16.mxu0 0
        %401 = vmatpush2.bf16.msra.mxu0 0
        %402 = vmatprep.subr.bf16.mxu0 0
        %403 = vmatpush2.bf16.msra.mxu0 0
        %404 = vmatprep.subr.bf16.mxu0 0
        %405 = vmatpush2.bf16.msra.mxu0 0
        %406 = vmatprep.mubr.bf16.mxu0 0
        %407 = vmatmul.mubr.bf16.gmra.mxu0 %v372
        %v408 = vpop.f32.mrf.mxu0
        %v409 = vadd.f32 0.0, %v408
        %v410 = vpop.f32.mrf.mxu0
        %v411 = vpop.f32.mrf.mxu0
        %v412 = vpop.f32.mrf.mxu0
        %413 = vdwg.mxu0
        %v414 = vld [vmem:[#allocation7 + $0x20] sm:$0xf]
        %v415 = vld [vmem:[#allocation7 + $0x24] sm:$0xf]
        %v416 = vld [vmem:[#allocation7 + $0x28] sm:$0xf]
        %v417 = vld [vmem:[#allocation7 + $0x2c] sm:$0xf]
        %v422 = vunpack.c.l.b16 %v414
        %v423 = vunpack.c.l.b16 %v415
        %v424 = vunpack.c.l.b16 %v416
        %v425 = vunpack.c.l.b16 %v417
        %v426 = vpack.c.b16 %v423, %v422
        %v427 = vpack.c.b16 %v425, %v424
        %vm430 = vcmask 261120
        %v432 = vsel %vm430, %v337, 0
        %434 = vmatprep.subr.bf16.mxu0 0
        %435 = vmatpush1.bf16.msra.mxu0 0
        %436 = vmatprep.subr.bf16.mxu0 0
        %437 = vmatpush1.bf16.msra.mxu0 0
        %438 = vmatprep.subr.bf16.mxu0 0
        %439 = vmatpush1.bf16.msra.mxu0 0
        %440 = vmatprep.subr.bf16.mxu0 0
        %441 = vmatpush1.bf16.msra.mxu0 0
        %442 = vmatprep.subr.bf16.mxu0 0
        %443 = vmatpush1.bf16.msra.mxu0 0
        %444 = vmatprep.subr.bf16.mxu0 0
        %445 = vmatpush1.bf16.msra.mxu0 0
        %446 = vmatprep.subr.bf16.mxu0 0
        %447 = vmatpush1.bf16.msra.mxu0 %v427
        %448 = vmatprep.subr.bf16.mxu0 0
        %449 = vmatpush1.bf16.msra.mxu0 %v426
        %450 = vmatprep.subr.bf16.mxu0 0
        %451 = vmatpush2.bf16.msra.mxu0 0
        %452 = vmatprep.subr.bf16.mxu0 0
        %453 = vmatpush2.bf16.msra.mxu0 0
        %454 = vmatprep.subr.bf16.mxu0 0
        %455 = vmatpush2.bf16.msra.mxu0 0
        %456 = vmatprep.subr.bf16.mxu0 0
        %457 = vmatpush2.bf16.msra.mxu0 0
        %458 = vmatprep.subr.bf16.mxu0 0
        %459 = vmatpush2.bf16.msra.mxu0 0
        %460 = vmatprep.subr.bf16.mxu0 0
        %461 = vmatpush2.bf16.msra.mxu0 0
        %462 = vmatprep.subr.bf16.mxu0 0
        %463 = vmatpush2.bf16.msra.mxu0 0
        %464 = vmatprep.subr.bf16.mxu0 0
        %465 = vmatpush2.bf16.msra.mxu0 0
        %466 = vmatprep.mubr.bf16.mxu0 0
        %467 = vmatmul.mubr.bf16.gmra.mxu0 %v432
        %v468 = vpop.f32.mrf.mxu0
        %v469 = vadd.f32 0.0, %v468
        %v470 = vpop.f32.mrf.mxu0
        %v471 = vpop.f32.mrf.mxu0
        %v472 = vpop.f32.mrf.mxu0
        %473 = vdwg.mxu0
        %v474 = vsub.f32 %v469, %v409
        %v475 = vld [vmem:[%s4] sm:$0x1]
        %v477 = vlaneseq
        %v478 = vshrl.u32 %v477, 7
        %v479 = vsub.s32 0, %v478
        %v480 = vrot.slane %v475, %v479
        %v482 = vadd.f32 %v474, %v480
        %v483 = vand.u32 2147483647, %v482
        %v484 = vpack.c.bf16 %v483, %v483
        %v485 = vadd.f32 %v469, %v409
        %v486 = vpack.c.bf16 %v485, %v485
        %v487 = vld [vmem:[#allocation8] sm:$0xf]
        %v488 = vld [vmem:[#allocation8 + $0x4] sm:$0xf]
        %v489 = vld [vmem:[#allocation8 + $0x8] sm:$0xf]
        %v490 = vld [vmem:[#allocation8 + $0xc] sm:$0xf]
        %v491 = vld [vmem:[#allocation8 + $0x10] sm:$0xf]
        %v492 = vld [vmem:[#allocation8 + $0x14] sm:$0xf]
        %v493 = vld [vmem:[#allocation8 + $0x18] sm:$0xf]
        %v494 = vld [vmem:[#allocation8 + $0x1c] sm:$0xf]
        %v495 = vld [vmem:[#allocation8 + $0x20] sm:$0xf]
        %v496 = vld [vmem:[#allocation8 + $0x24] sm:$0xf]
        %v497 = vld [vmem:[#allocation8 + $0x28] sm:$0xf]
        %v498 = vld [vmem:[#allocation8 + $0x2c] sm:$0xf]
        %v499 = vld [vmem:[#allocation8 + $0x30] sm:$0xf]
        %v500 = vld [vmem:[#allocation8 + $0x34] sm:$0xf]
        %v501 = vld [vmem:[#allocation8 + $0x38] sm:$0xf]
        %v502 = vld [vmem:[#allocation8 + $0x3c] sm:$0xf]
        %v503 = vld [vmem:[#allocation8 + $0x40] sm:$0xf]
        %v504 = vld [vmem:[#allocation8 + $0x44] sm:$0xf]
        %v505 = vld [vmem:[#allocation8 + $0x48] sm:$0xf]
        %v506 = vld [vmem:[#allocation8 + $0x4c] sm:$0xf]
        %v507 = vld [vmem:[#allocation8 + $0x50] sm:$0xf]
        %v508 = vld [vmem:[#allocation8 + $0x54] sm:$0xf]
        %v509 = vld [vmem:[#allocation8 + $0x58] sm:$0xf]
        %v510 = vld [vmem:[#allocation8 + $0x5c] sm:$0xf]
        %v511 = vld [vmem:[#allocation8 + $0x60] sm:$0xf]
        %v512 = vld [vmem:[#allocation8 + $0x64] sm:$0xf]
        %v513 = vld [vmem:[#allocation8 + $0x68] sm:$0xf]
        %v514 = vld [vmem:[#allocation8 + $0x6c] sm:$0xf]
        %v515 = vld [vmem:[#allocation8 + $0x70] sm:$0xf]
        %v516 = vld [vmem:[#allocation8 + $0x74] sm:$0xf]
        %v517 = vld [vmem:[#allocation8 + $0x78] sm:$0xf]
        %v518 = vld [vmem:[#allocation8 + $0x7c] sm:$0xf]
        %v535 = vunpack.c.l.b16 %v503
        %v536 = vunpack.c.l.b16 %v504
        %v537 = vunpack.c.l.b16 %v505
        %v538 = vunpack.c.l.b16 %v506
        %v539 = vunpack.c.l.b16 %v507
        %v540 = vunpack.c.l.b16 %v508
        %v541 = vunpack.c.l.b16 %v509
        %v542 = vunpack.c.l.b16 %v510
        %v543 = vunpack.c.l.b16 %v511
        %v544 = vunpack.c.l.b16 %v512
        %v545 = vunpack.c.l.b16 %v513
        %v546 = vunpack.c.l.b16 %v514
        %v547 = vunpack.c.l.b16 %v515
        %v548 = vunpack.c.l.b16 %v516
        %v549 = vunpack.c.l.b16 %v517
        %v550 = vunpack.c.l.b16 %v518
        %v551 = vpack.c.b16 %v536, %v535
        %v552 = vpack.c.b16 %v538, %v537
        %v553 = vpack.c.b16 %v540, %v539
        %v554 = vpack.c.b16 %v542, %v541
        %v555 = vpack.c.b16 %v544, %v543
        %v556 = vpack.c.b16 %v546, %v545
        %v557 = vpack.c.b16 %v548, %v547
        %v558 = vpack.c.b16 %v550, %v549
        %567 = vmatprep.subr.bf16.mxu0 0
        %568 = vmatpush1.bf16.msra.mxu0 %v558
        %569 = vmatprep.subr.bf16.mxu0 0
        %570 = vmatpush1.bf16.msra.mxu0 %v557
        %571 = vmatprep.subr.bf16.mxu0 0
        %572 = vmatpush1.bf16.msra.mxu0 %v556
        %573 = vmatprep.subr.bf16.mxu0 0
        %574 = vmatpush1.bf16.msra.mxu0 %v555
        %575 = vmatprep.subr.bf16.mxu0 0
        %576 = vmatpush1.bf16.msra.mxu0 %v554
        %577 = vmatprep.subr.bf16.mxu0 0
        %578 = vmatpush1.bf16.msra.mxu0 %v553
        %579 = vmatprep.subr.bf16.mxu0 0
        %580 = vmatpush1.bf16.msra.mxu0 %v552
        %581 = vmatprep.subr.bf16.mxu0 0
        %582 = vmatpush1.bf16.msra.mxu0 %v551
        %583 = vmatprep.subr.bf16.mxu0 0
        %584 = vmatpush2.bf16.msra.mxu0 0
        %585 = vmatprep.subr.bf16.mxu0 0
        %586 = vmatpush2.bf16.msra.mxu0 0
        %587 = vmatprep.subr.bf16.mxu0 0
        %588 = vmatpush2.bf16.msra.mxu0 0
        %589 = vmatprep.subr.bf16.mxu0 0
        %590 = vmatpush2.bf16.msra.mxu0 0
        %591 = vmatprep.subr.bf16.mxu0 0
        %592 = vmatpush2.bf16.msra.mxu0 0
        %593 = vmatprep.subr.bf16.mxu0 0
        %594 = vmatpush2.bf16.msra.mxu0 0
        %595 = vmatprep.subr.bf16.mxu0 0
        %596 = vmatpush2.bf16.msra.mxu0 0
        %597 = vmatprep.subr.bf16.mxu0 0
        %598 = vmatpush2.bf16.msra.mxu0 0
        %599 = vmatprep.mubr.bf16.mxu0 0
        %600 = vmatmul.mubr.bf16.gmra.mxu0 %v486
        %v601 = vpop.f32.mrf.mxu0
        %v602 = vadd.f32 0.0, %v601
        %v603 = vpop.f32.mrf.mxu0
        %v604 = vpop.f32.mrf.mxu0
        %v605 = vpop.f32.mrf.mxu0
        %606 = vdwg.mxu0
        %v623 = vunpack.c.l.b16 %v487
        %v624 = vunpack.c.l.b16 %v488
        %v625 = vunpack.c.l.b16 %v489
        %v626 = vunpack.c.l.b16 %v490
        %v627 = vunpack.c.l.b16 %v491
        %v628 = vunpack.c.l.b16 %v492
        %v629 = vunpack.c.l.b16 %v493
        %v630 = vunpack.c.l.b16 %v494
        %v631 = vunpack.c.l.b16 %v495
        %v632 = vunpack.c.l.b16 %v496
        %v633 = vunpack.c.l.b16 %v497
        %v634 = vunpack.c.l.b16 %v498
        %v635 = vunpack.c.l.b16 %v499
        %v636 = vunpack.c.l.b16 %v500
        %v637 = vunpack.c.l.b16 %v501
        %v638 = vunpack.c.l.b16 %v502
        %v639 = vpack.c.b16 %v624, %v623
        %v640 = vpack.c.b16 %v626, %v625
        %v641 = vpack.c.b16 %v628, %v627
        %v642 = vpack.c.b16 %v630, %v629
        %v643 = vpack.c.b16 %v632, %v631
        %v644 = vpack.c.b16 %v634, %v633
        %v645 = vpack.c.b16 %v636, %v635
        %v646 = vpack.c.b16 %v638, %v637
        %655 = vmatprep.subr.bf16.mxu0 0
        %656 = vmatpush1.bf16.msra.mxu0 %v646
        %657 = vmatprep.subr.bf16.mxu0 0
        %658 = vmatpush1.bf16.msra.mxu0 %v645
        %659 = vmatprep.subr.bf16.mxu0 0
        %660 = vmatpush1.bf16.msra.mxu0 %v644
        %661 = vmatprep.subr.bf16.mxu0 0
        %662 = vmatpush1.bf16.msra.mxu0 %v643
        %663 = vmatprep.subr.bf16.mxu0 0
        %664 = vmatpush1.bf16.msra.mxu0 %v642
        %665 = vmatprep.subr.bf16.mxu0 0
        %666 = vmatpush1.bf16.msra.mxu0 %v641
        %667 = vmatprep.subr.bf16.mxu0 0
        %668 = vmatpush1.bf16.msra.mxu0 %v640
        %669 = vmatprep.subr.bf16.mxu0 0
        %670 = vmatpush1.bf16.msra.mxu0 %v639
        %671 = vmatprep.subr.bf16.mxu0 0
        %672 = vmatpush2.bf16.msra.mxu0 0
        %673 = vmatprep.subr.bf16.mxu0 0
        %674 = vmatpush2.bf16.msra.mxu0 0
        %675 = vmatprep.subr.bf16.mxu0 0
        %676 = vmatpush2.bf16.msra.mxu0 0
        %677 = vmatprep.subr.bf16.mxu0 0
        %678 = vmatpush2.bf16.msra.mxu0 0
        %679 = vmatprep.subr.bf16.mxu0 0
        %680 = vmatpush2.bf16.msra.mxu0 0
        %681 = vmatprep.subr.bf16.mxu0 0
        %682 = vmatpush2.bf16.msra.mxu0 0
        %683 = vmatprep.subr.bf16.mxu0 0
        %684 = vmatpush2.bf16.msra.mxu0 0
        %685 = vmatprep.subr.bf16.mxu0 0
        %686 = vmatpush2.bf16.msra.mxu0 0
        %687 = vmatprep.mubr.bf16.mxu0 0
        %688 = vmatmul.mubr.bf16.gmra.mxu0 %v484
        %v689 = vpop.f32.mrf.mxu0
        %v690 = vadd.f32 %v602, %v689
        %v691 = vpop.f32.mrf.mxu0
        %v692 = vpop.f32.mrf.mxu0
        %v693 = vpop.f32.mrf.mxu0
        %694 = vdwg.mxu0
        %v695 = vld [vmem:[%s5] sm:$0x1]
        %v697 = vlaneseq
        %v698 = vshrl.u32 %v697, 7
        %v699 = vsub.s32 0, %v698
        %v700 = vrot.slane %v695, %v699
        %v702 = vadd.f32 %v690, %v700
        %703 = vst [vmem:[%s332] sm:$0xff] %v702
        %s704 = sand.u32 %s171, 1
        %s705 = scalar_lea.sflag [#allocation4], %s704
        %s706 = sand.u32 %s171, 1
        %s707 = smul.addr %s706, 8
        %s708 = scalar_lea.vmem [#allocation10], %s707
        // Predicated region
        $region61: #{tpu_custom_call.1} parent=43 // pred_check
          %p709 = pneg %p181
        $region62: #{tpu_custom_call.1} parent=43 // pred_check_branch
          %711 = sbr.rel (%p709) target = $region64
        $region63: #{tpu_custom_call.1} parent=43 // pred_region
          %s713 = ssub.s32 128, 128
          %714 = vsyncadd %s705, %s713
          %s715 = smul.addr %s27, 128
          %s716 = scalar_lea.hbm %s6, %s715
          %s718 = sshll.u32 %s708, 4
          %s719 = int_to_ptr.vmem [resolvable:$true] %s718
          %721 = dma.vmem_to_hbm [thread:$0]  %s719, 128, %s716, %s705
        $region64: #{tpu_custom_call.1} parent=43 // pred_fallthru
          _
      $region44: #{tpu_custom_call.1} parent=5 // pred_fallthru
        _
      %p722 = scmp.le.s32.totalorder 2, %s22
      // Predicated region
      $region65: #{tpu_custom_call.1} parent=5 // pred_check
        %p723 = pneg %p722
      $region66: #{tpu_custom_call.1} parent=5 // pred_check_branch
        %725 = sbr.rel (%p723) target = $region68
      $region67: #{tpu_custom_call.1} parent=5 // pred_region
        %s726 = ssub.s32 %s22, 2
        // Predicated region
        $region69: #{tpu_custom_call.1} parent=67 // pred_check
          %p727 = pneg %p187
        $region70: #{tpu_custom_call.1} parent=67 // pred_check_branch
          %729 = sbr.rel (%p727) target = $region72
        $region71: #{tpu_custom_call.1} parent=67 // pred_region
          %s730 = sand.u32 %s172, 1
          %s731 = scalar_lea.sflag [#allocation4], %s730
          %s732 = sand.u32 %s172, 1
          %s733 = smul.addr %s732, 8
          %s734 = scalar_lea.vmem [#allocation10], %s733
          %735 = dma.done %s731, 128
        $region72: #{tpu_custom_call.1} parent=67 // pred_fallthru
          _
      $region68: #{tpu_custom_call.1} parent=5 // pred_fallthru
        _
    $region6: #{tpu_custom_call.1} parent=1 // loop_footer
      %s26 = sadd.s32 1, %s22
    $region7: #{tpu_custom_call.1} parent=1 // loop_footer_branch
      %21 = sbr.rel target = $region3
    $region8: #{tpu_custom_call.1} parent=1 // loop_exit
      _
    %736 = vsyncpa [#allocation3], 1
    %s737 = scalar_lea.sflag [#allocation3], 1
    %738 = vsyncpa %s737, 1
    %739 = vsyncpa [#allocation6], 1
    %s740 = scalar_lea.sflag [#allocation6], 1
    %741 = vsyncpa %s740, 1
    %742 = vsyncpa [#allocation9], 1
    %743 = vsyncpa [#allocation4], 1
    %s744 = scalar_lea.sflag [#allocation4], 1
    %745 = vsyncpa %s744, 1

</llo_original>
